<compile_context>
chip_gen: v5e
topology: v5e:2x2
jax: 0.10.0
libtpu: 0.0.40
codegen_flags: <defaults>
</compile_context>

<pallas_src>
import functools

import jax
import jax.numpy as jnp
import numpy as np
from jax.experimental import pallas as pl
from jax.experimental.pallas import tpu as pltpu


def _round_up(x, m):
    return (x + m - 1) // m * m


def _pad_kernel(x_ref, sw_ref, sh_ref, o_ref, *, p, H, W):
    """Assemble padded cube-sphere faces for a block of (batch*channel) slices.

    The face and row axes are fused: face k of slice t lives at rows
    [k*H, (k+1)*H) of x_ref / sw_ref and rows [k*Hp, (k+1)*Hp) of o_ref.

      x_ref : (T, 5*H,  W)   raw faces
      sw_ref: (T, 5*H,  p)   right-edge pad strip of each face (pre-rotated)
      sh_ref: (T, 2*p,  Hp)  face-4 top strip (rows [0,p)) then bottom strip
      o_ref : (T, 5*Hp, Wp)  padded output
    """
    Hp, Wp = H + 2 * p, W + 2 * p
    T = x_ref.shape[0]
    PREV = (3, 0, 1, 2)
    NXT = (1, 2, 3, 0)

    def band(face, r0, nrows):
        """Width-padded rows [r0, r0+nrows) of `face` -> (T, nrows, Wp)."""
        rows = slice(face * H + r0, face * H + r0 + nrows)
        mid = x_ref[:, rows, :]                                       # (T, n, W)
        # pole replication: broadcast column 0 across the p left-pad lanes
        left = jnp.broadcast_to(x_ref[:, rows, 0:1], (T, nrows, p))
        right = sw_ref[:, rows, :]                                    # (T, n, p)
        return jnp.concatenate([left, mid, right], axis=-1)

    # Faces 0..3: top halo = last p width-padded rows of the previous face,
    # middle = width-padded own face, bottom halo = first p rows of next face.
    for k in range(4):
        base = k * Hp
        o_ref[:, base:base + p, :] = band(PREV[k], H - p, p)
        o_ref[:, base + p:base + p + H, :] = band(k, 0, H)
        o_ref[:, base + p + H:base + Hp, :] = band(NXT[k], 0, p)

    # Face 4 (top panel): left pad = face 0's right edge, right pad = rotated
    # face-2 strip (already in sw), top/bottom halos fully pre-rotated in glue.
    base = 4 * Hp
    mid4 = jnp.concatenate(
        [x_ref[:, 0:H, W - p:], x_ref[:, 4 * H:5 * H, :], sw_ref[:, 4 * H:5 * H, :]],
        axis=-1)
    o_ref[:, base:base + p, :] = sh_ref[:, 0:p, :]
    o_ref[:, base + p:base + p + H, :] = mid4
    o_ref[:, base + p + H:base + Hp, :] = sh_ref[:, p:2 * p, :]


def cube_sphere_padding_2d(inputs, padding, *, vmem_budget_bytes=8 << 20):
    p = int(padding)
    B, C, F, H, W = inputs.shape
    assert F == 5, "cube-sphere input must have 5 faces"
    assert H == W, "cube-sphere faces must be square"
    Hp, Wp = H + 2 * p, W + 2 * p
    dtype = inputs.dtype
    itemsize = np.dtype(dtype).itemsize
    BC = B * C

    x = inputs.reshape(BC, 5, H, W)
    f0, f1, f2, f3, f4 = (x[:, i] for i in range(5))

    # ---- glue: per-face right-edge strips (pre-rotated where needed) -------
    s0 = f4[:, :, :p]                                               # face 0: raw
    s1 = jnp.swapaxes(jnp.flip(f4[:, -p:, :], axis=1), 1, 2)        # (BC, W, p)
    s2 = jnp.flip(f4[:, :, -p:], axis=(1, 2))                       # (BC, H, p)
    s3 = jnp.swapaxes(jnp.flip(f4[:, :p, :], axis=2), 1, 2)         # (BC, W, p)
    s4 = jnp.flip(f2[:, :, -p:], axis=(1, 2))                       # (BC, H, p)
    side_w = jnp.stack([s0, s1, s2, s3, s4], axis=1).reshape(BC, 5 * H, p)

    # Face-4 top/bottom halos: rotations of stage-2 columns of faces 3 / 1,
    # which reduce to raw-input column slices.
    col3 = jnp.concatenate([f2[:, -p:, -p:], f3[:, :, -p:], f0[:, :p, -p:]], axis=1)
    col1 = jnp.concatenate([f0[:, -p:, -p:], f1[:, :, -p:], f2[:, :p, -p:]], axis=1)
    top4 = jnp.swapaxes(jnp.flip(col3, axis=1), 1, 2)               # (BC, p, Hp)
    bot4 = jnp.swapaxes(jnp.flip(col1, axis=2), 1, 2)               # (BC, p, Hp)
    side_h = jnp.concatenate([top4, bot4], axis=1)                  # (BC, 2p, Hp)

    # Fuse (face, row) so all in-kernel accesses are plain static slices.
    xf = x.reshape(BC, 5 * H, W)

    # ---- pick how many (b, c) slices each grid step handles ----------------
    # Budget the double-buffered, (8,128)-padded VMEM footprint so one setting
    # is safe on v5e (16 MiB scoped default), v6e (128 MiB) and v7x (64 MiB).
    def vmem_elems(r, c):
        return _round_up(r, 8) * _round_up(c, 128)

    per_slice_vmem = itemsize * (
        vmem_elems(5 * H, W) + vmem_elems(5 * H, p)
        + vmem_elems(2 * p, Hp) + vmem_elems(5 * Hp, Wp))
    tbc = int(max(1, min(BC, vmem_budget_bytes // (2 * per_slice_vmem))))
    n_blocks = int(pl.cdiv(BC, tbc))
    BCp = n_blocks * tbc
    if BCp != BC:  # pad the (b, c) axis so every block is full
        pad = ((0, BCp - BC), (0, 0), (0, 0))
        xf = jnp.pad(xf, pad)
        side_w = jnp.pad(side_w, pad)
        side_h = jnp.pad(side_h, pad)

    raw_bytes = itemsize * BCp * (5 * H * W + 5 * H * p + 2 * p * Hp + 5 * Hp * Wp)

    out = pl.pallas_call(
        functools.partial(_pad_kernel, p=p, H=H, W=W),
        out_shape=jax.ShapeDtypeStruct((BCp, 5 * Hp, Wp), dtype),
        grid_spec=pltpu.PrefetchScalarGridSpec(
            num_scalar_prefetch=0,
            grid=(n_blocks,),
            in_specs=[
                pl.BlockSpec((tbc, 5 * H, W), lambda i: (i, 0, 0)),
                pl.BlockSpec((tbc, 5 * H, p), lambda i: (i, 0, 0)),
                pl.BlockSpec((tbc, 2 * p, Hp), lambda i: (i, 0, 0)),
            ],
            out_specs=pl.BlockSpec((tbc, 5 * Hp, Wp), lambda i: (i, 0, 0)),
        ),
        compiler_params=pltpu.CompilerParams(
            dimension_semantics=("parallel",),      # v7x: shard across both TCs
            vmem_limit_bytes=32 * 1024 * 1024),     # raise v5e's 16 MiB default
        cost_estimate=pl.CostEstimate(
            flops=0, transcendentals=0, bytes_accessed=int(raw_bytes)),
    )(xf, side_w, side_h)

    return out[:BC].reshape(B, C, 5, Hp, Wp)


def cube_sphere_padding_2d_ref(x, p):
    """Pure-JAX mirror of the PyTorch forward (for verification)."""
    f = [x[:, :, i] for i in range(5)]

    def rep(a):
        return jnp.concatenate([a[:, :, :, 0:1]] * p, axis=3)

    w0 = jnp.concatenate([rep(f[0]), f[0], f[4][:, :, :, :p]], axis=3)
    w1 = jnp.concatenate([rep(f[1]), f[1],
                          jnp.swapaxes(jnp.flip(f[4][:, :, -p:, :], axis=2), 2, 3)], axis=3)
    w2 = jnp.concatenate([rep(f[2]), f[2],
                          jnp.flip(f[4][:, :, :, -p:], axis=(2, 3))], axis=3)
    w3 = jnp.concatenate([rep(f[3]), f[3],
                          jnp.swapaxes(jnp.flip(f[4][:, :, :p, :], axis=3), 2, 3)], axis=3)
    w4 = jnp.concatenate([f[0][:, :, :, -p:], f[4],
                          jnp.flip(f[2][:, :, :, -p:], axis=(2, 3))], axis=3)
    o0 = jnp.concatenate([w3[:, :, -p:, :], w0, w1[:, :, :p, :]], axis=2)
    o1 = jnp.concatenate([w0[:, :, -p:, :], w1, w2[:, :, :p, :]], axis=2)
    o2 = jnp.concatenate([w1[:, :, -p:, :], w2, w3[:, :, :p, :]], axis=2)
    o3 = jnp.concatenate([w2[:, :, -p:, :], w3, w0[:, :, :p, :]], axis=2)
    top = jnp.swapaxes(jnp.flip(o3[:, :, :, -2 * p:-p], axis=2), 2, 3)
    bot = jnp.swapaxes(jnp.flip(o1[:, :, :, -2 * p:-p], axis=3), 2, 3)
    o4 = jnp.concatenate([top, w4, bot], axis=2)
    return jnp.stack([o0, o1, o2, o3, o4], axis=2)


if __name__ == "__main__":
    key = jax.random.PRNGKey(0)
    B, C, H, W, P = 2, 4, 16, 16, 2
    x = jax.random.normal(key, (B, C, 5, H, W), dtype=jnp.float32)

    ref = jax.block_until_ready(cube_sphere_padding_2d_ref(x, P))

    # Default path: all 8 (b, c) slices fit in one grid step.
    out = jax.block_until_ready(cube_sphere_padding_2d(x, P))
    assert out.shape == (B, C, 5, H + 2 * P, W + 2 * P), out.shape
    np.testing.assert_array_equal(np.asarray(out), np.asarray(ref))

    # Multi-block path with a ragged tail (forces TBC=3, grid=3, padded B*C=9).
    out_small = jax.block_until_ready(
        cube_sphere_padding_2d(x, P, vmem_budget_bytes=900_000))
    np.testing.assert_array_equal(np.asarray(out_small), np.asarray(ref))

    print("KERNEL_OK")
</pallas_src>

<mosaic_0001>
module attributes {stable_mosaic.version = 11 : i64} {
  func.func @_pad_kernel(%arg0: i32, %arg1: memref<8x80x16xf32, #tpu.memory_space<vmem>>, %arg2: memref<8x80x2xf32, #tpu.memory_space<vmem>>, %arg3: memref<8x4x20xf32, #tpu.memory_space<vmem>>, %arg4: memref<8x100x20xf32, #tpu.memory_space<vmem>>) attributes {dimension_semantics = [#tpu.dimension_semantics<parallel>], iteration_bounds = array<i64: 1>, scalar_prefetch = 0 : i64, scratch_operands = 0 : i64, tpu.core_type = #tpu.core_type<tc>, window_params = [{transform_indices = @transform_0, window_bounds = array<i64: 8, 80, 16>}, {transform_indices = @transform_1, window_bounds = array<i64: 8, 80, 2>}, {transform_indices = @transform_2, window_bounds = array<i64: 8, 4, 20>}, {transform_indices = @transform_3, window_bounds = array<i64: 8, 100, 20>}]} {
    %c0 = arith.constant 0 : index
    %c62 = arith.constant 62 : index
    %c0_0 = arith.constant 0 : index
    %0 = vector.load %arg1[%c0, %c62, %c0_0] : memref<8x80x16xf32, #tpu.memory_space<vmem>>, vector<8x2x16xf32>
    %c0_1 = arith.constant 0 : index
    %c62_2 = arith.constant 62 : index
    %c0_3 = arith.constant 0 : index
    %1 = vector.load %arg1[%c0_1, %c62_2, %c0_3] : memref<8x80x16xf32, #tpu.memory_space<vmem>>, vector<8x2x1xf32>
    %2 = vector.shape_cast %1 : vector<8x2x1xf32> to vector<8x2x1xf32>
    %3 = vector.broadcast %2 : vector<8x2x1xf32> to vector<8x2x2xf32>
    %c0_4 = arith.constant 0 : index
    %c62_5 = arith.constant 62 : index
    %c0_6 = arith.constant 0 : index
    %4 = vector.load %arg2[%c0_4, %c62_5, %c0_6] : memref<8x80x2xf32, #tpu.memory_space<vmem>>, vector<8x2x2xf32>
    %5 = tpu.concatenate %3, %0, %4 in 2 : vector<8x2x2xf32>, vector<8x2x16xf32>, vector<8x2x2xf32> -> vector<8x2x20xf32>
    %c0_7 = arith.constant 0 : index
    %c0_8 = arith.constant 0 : index
    %c0_9 = arith.constant 0 : index
    %6 = vector.load %arg4[%c0_7, %c0_8, %c0_9] : memref<8x100x20xf32, #tpu.memory_space<vmem>>, vector<8x2x20xf32>
    tpu.vector_store %arg4[%c0_7, %c0_8, %c0_9], %5 {strides = array<i32>} : memref<8x100x20xf32, #tpu.memory_space<vmem>>, vector<8x2x20xf32>,
    %c0_10 = arith.constant 0 : index
    %c0_11 = arith.constant 0 : index
    %c0_12 = arith.constant 0 : index
    %7 = vector.load %arg1[%c0_10, %c0_11, %c0_12] : memref<8x80x16xf32, #tpu.memory_space<vmem>>, vector<8x16x16xf32>
    %c0_13 = arith.constant 0 : index
    %c0_14 = arith.constant 0 : index
    %c0_15 = arith.constant 0 : index
    %8 = vector.load %arg1[%c0_13, %c0_14, %c0_15] : memref<8x80x16xf32, #tpu.memory_space<vmem>>, vector<8x16x1xf32>
    %9 = vector.shape_cast %8 : vector<8x16x1xf32> to vector<8x16x1xf32>
    %10 = vector.broadcast %9 : vector<8x16x1xf32> to vector<8x16x2xf32>
    %c0_16 = arith.constant 0 : index
    %c0_17 = arith.constant 0 : index
    %c0_18 = arith.constant 0 : index
    %11 = vector.load %arg2[%c0_16, %c0_17, %c0_18] : memref<8x80x2xf32, #tpu.memory_space<vmem>>, vector<8x16x2xf32>
    %12 = tpu.concatenate %10, %7, %11 in 2 : vector<8x16x2xf32>, vector<8x16x16xf32>, vector<8x16x2xf32> -> vector<8x16x20xf32>
    %c0_19 = arith.constant 0 : index
    %c2 = arith.constant 2 : index
    %c0_20 = arith.constant 0 : index
    %13 = vector.load %arg4[%c0_19, %c2, %c0_20] : memref<8x100x20xf32, #tpu.memory_space<vmem>>, vector<8x16x20xf32>
    tpu.vector_store %arg4[%c0_19, %c2, %c0_20], %12 {strides = array<i32>} : memref<8x100x20xf32, #tpu.memory_space<vmem>>, vector<8x16x20xf32>,
    %c0_21 = arith.constant 0 : index
    %c16 = arith.constant 16 : index
    %c0_22 = arith.constant 0 : index
    %14 = vector.load %arg1[%c0_21, %c16, %c0_22] : memref<8x80x16xf32, #tpu.memory_space<vmem>>, vector<8x2x16xf32>
    %c0_23 = arith.constant 0 : index
    %c16_24 = arith.constant 16 : index
    %c0_25 = arith.constant 0 : index
    %15 = vector.load %arg1[%c0_23, %c16_24, %c0_25] : memref<8x80x16xf32, #tpu.memory_space<vmem>>, vector<8x2x1xf32>
    %16 = vector.shape_cast %15 : vector<8x2x1xf32> to vector<8x2x1xf32>
    %17 = vector.broadcast %16 : vector<8x2x1xf32> to vector<8x2x2xf32>
    %c0_26 = arith.constant 0 : index
    %c16_27 = arith.constant 16 : index
    %c0_28 = arith.constant 0 : index
    %18 = vector.load %arg2[%c0_26, %c16_27, %c0_28] : memref<8x80x2xf32, #tpu.memory_space<vmem>>, vector<8x2x2xf32>
    %19 = tpu.concatenate %17, %14, %18 in 2 : vector<8x2x2xf32>, vector<8x2x16xf32>, vector<8x2x2xf32> -> vector<8x2x20xf32>
    %c0_29 = arith.constant 0 : index
    %c18 = arith.constant 18 : index
    %c0_30 = arith.constant 0 : index
    %20 = vector.load %arg4[%c0_29, %c18, %c0_30] : memref<8x100x20xf32, #tpu.memory_space<vmem>>, vector<8x2x20xf32>
    tpu.vector_store %arg4[%c0_29, %c18, %c0_30], %19 {strides = array<i32>} : memref<8x100x20xf32, #tpu.memory_space<vmem>>, vector<8x2x20xf32>,
    %c0_31 = arith.constant 0 : index
    %c14 = arith.constant 14 : index
    %c0_32 = arith.constant 0 : index
    %21 = vector.load %arg1[%c0_31, %c14, %c0_32] : memref<8x80x16xf32, #tpu.memory_space<vmem>>, vector<8x2x16xf32>
    %c0_33 = arith.constant 0 : index
    %c14_34 = arith.constant 14 : index
    %c0_35 = arith.constant 0 : index
    %22 = vector.load %arg1[%c0_33, %c14_34, %c0_35] : memref<8x80x16xf32, #tpu.memory_space<vmem>>, vector<8x2x1xf32>
    %23 = vector.shape_cast %22 : vector<8x2x1xf32> to vector<8x2x1xf32>
    %24 = vector.broadcast %23 : vector<8x2x1xf32> to vector<8x2x2xf32>
    %c0_36 = arith.constant 0 : index
    %c14_37 = arith.constant 14 : index
    %c0_38 = arith.constant 0 : index
    %25 = vector.load %arg2[%c0_36, %c14_37, %c0_38] : memref<8x80x2xf32, #tpu.memory_space<vmem>>, vector<8x2x2xf32>
    %26 = tpu.concatenate %24, %21, %25 in 2 : vector<8x2x2xf32>, vector<8x2x16xf32>, vector<8x2x2xf32> -> vector<8x2x20xf32>
    %c0_39 = arith.constant 0 : index
    %c20 = arith.constant 20 : index
    %c0_40 = arith.constant 0 : index
    %27 = vector.load %arg4[%c0_39, %c20, %c0_40] : memref<8x100x20xf32, #tpu.memory_space<vmem>>, vector<8x2x20xf32>
    tpu.vector_store %arg4[%c0_39, %c20, %c0_40], %26 {strides = array<i32>} : memref<8x100x20xf32, #tpu.memory_space<vmem>>, vector<8x2x20xf32>,
    %c0_41 = arith.constant 0 : index
    %c16_42 = arith.constant 16 : index
    %c0_43 = arith.constant 0 : index
    %28 = vector.load %arg1[%c0_41, %c16_42, %c0_43] : memref<8x80x16xf32, #tpu.memory_space<vmem>>, vector<8x16x16xf32>
    %c0_44 = arith.constant 0 : index
    %c16_45 = arith.constant 16 : index
    %c0_46 = arith.constant 0 : index
    %29 = vector.load %arg1[%c0_44, %c16_45, %c0_46] : memref<8x80x16xf32, #tpu.memory_space<vmem>>, vector<8x16x1xf32>
    %30 = vector.shape_cast %29 : vector<8x16x1xf32> to vector<8x16x1xf32>
    %31 = vector.broadcast %30 : vector<8x16x1xf32> to vector<8x16x2xf32>
    %c0_47 = arith.constant 0 : index
    %c16_48 = arith.constant 16 : index
    %c0_49 = arith.constant 0 : index
    %32 = vector.load %arg2[%c0_47, %c16_48, %c0_49] : memref<8x80x2xf32, #tpu.memory_space<vmem>>, vector<8x16x2xf32>
    %33 = tpu.concatenate %31, %28, %32 in 2 : vector<8x16x2xf32>, vector<8x16x16xf32>, vector<8x16x2xf32> -> vector<8x16x20xf32>
    %c0_50 = arith.constant 0 : index
    %c22 = arith.constant 22 : index
    %c0_51 = arith.constant 0 : index
    %34 = vector.load %arg4[%c0_50, %c22, %c0_51] : memref<8x100x20xf32, #tpu.memory_space<vmem>>, vector<8x16x20xf32>
    tpu.vector_store %arg4[%c0_50, %c22, %c0_51], %33 {strides = array<i32>} : memref<8x100x20xf32, #tpu.memory_space<vmem>>, vector<8x16x20xf32>,
    %c0_52 = arith.constant 0 : index
    %c32 = arith.constant 32 : index
    %c0_53 = arith.constant 0 : index
    %35 = vector.load %arg1[%c0_52, %c32, %c0_53] : memref<8x80x16xf32, #tpu.memory_space<vmem>>, vector<8x2x16xf32>
    %c0_54 = arith.constant 0 : index
    %c32_55 = arith.constant 32 : index
    %c0_56 = arith.constant 0 : index
    %36 = vector.load %arg1[%c0_54, %c32_55, %c0_56] : memref<8x80x16xf32, #tpu.memory_space<vmem>>, vector<8x2x1xf32>
    %37 = vector.shape_cast %36 : vector<8x2x1xf32> to vector<8x2x1xf32>
    %38 = vector.broadcast %37 : vector<8x2x1xf32> to vector<8x2x2xf32>
    %c0_57 = arith.constant 0 : index
    %c32_58 = arith.constant 32 : index
    %c0_59 = arith.constant 0 : index
    %39 = vector.load %arg2[%c0_57, %c32_58, %c0_59] : memref<8x80x2xf32, #tpu.memory_space<vmem>>, vector<8x2x2xf32>
    %40 = tpu.concatenate %38, %35, %39 in 2 : vector<8x2x2xf32>, vector<8x2x16xf32>, vector<8x2x2xf32> -> vector<8x2x20xf32>
    %c0_60 = arith.constant 0 : index
    %c38 = arith.constant 38 : index
    %c0_61 = arith.constant 0 : index
    %41 = vector.load %arg4[%c0_60, %c38, %c0_61] : memref<8x100x20xf32, #tpu.memory_space<vmem>>, vector<8x2x20xf32>
    tpu.vector_store %arg4[%c0_60, %c38, %c0_61], %40 {strides = array<i32>} : memref<8x100x20xf32, #tpu.memory_space<vmem>>, vector<8x2x20xf32>,
    %c0_62 = arith.constant 0 : index
    %c30 = arith.constant 30 : index
    %c0_63 = arith.constant 0 : index
    %42 = vector.load %arg1[%c0_62, %c30, %c0_63] : memref<8x80x16xf32, #tpu.memory_space<vmem>>, vector<8x2x16xf32>
    %c0_64 = arith.constant 0 : index
    %c30_65 = arith.constant 30 : index
    %c0_66 = arith.constant 0 : index
    %43 = vector.load %arg1[%c0_64, %c30_65, %c0_66] : memref<8x80x16xf32, #tpu.memory_space<vmem>>, vector<8x2x1xf32>
    %44 = vector.shape_cast %43 : vector<8x2x1xf32> to vector<8x2x1xf32>
    %45 = vector.broadcast %44 : vector<8x2x1xf32> to vector<8x2x2xf32>
    %c0_67 = arith.constant 0 : index
    %c30_68 = arith.constant 30 : index
    %c0_69 = arith.constant 0 : index
    %46 = vector.load %arg2[%c0_67, %c30_68, %c0_69] : memref<8x80x2xf32, #tpu.memory_space<vmem>>, vector<8x2x2xf32>
    %47 = tpu.concatenate %45, %42, %46 in 2 : vector<8x2x2xf32>, vector<8x2x16xf32>, vector<8x2x2xf32> -> vector<8x2x20xf32>
    %c0_70 = arith.constant 0 : index
    %c40 = arith.constant 40 : index
    %c0_71 = arith.constant 0 : index
    %48 = vector.load %arg4[%c0_70, %c40, %c0_71] : memref<8x100x20xf32, #tpu.memory_space<vmem>>, vector<8x2x20xf32>
    tpu.vector_store %arg4[%c0_70, %c40, %c0_71], %47 {strides = array<i32>} : memref<8x100x20xf32, #tpu.memory_space<vmem>>, vector<8x2x20xf32>,
    %c0_72 = arith.constant 0 : index
    %c32_73 = arith.constant 32 : index
    %c0_74 = arith.constant 0 : index
    %49 = vector.load %arg1[%c0_72, %c32_73, %c0_74] : memref<8x80x16xf32, #tpu.memory_space<vmem>>, vector<8x16x16xf32>
    %c0_75 = arith.constant 0 : index
    %c32_76 = arith.constant 32 : index
    %c0_77 = arith.constant 0 : index
    %50 = vector.load %arg1[%c0_75, %c32_76, %c0_77] : memref<8x80x16xf32, #tpu.memory_space<vmem>>, vector<8x16x1xf32>
    %51 = vector.shape_cast %50 : vector<8x16x1xf32> to vector<8x16x1xf32>
    %52 = vector.broadcast %51 : vector<8x16x1xf32> to vector<8x16x2xf32>
    %c0_78 = arith.constant 0 : index
    %c32_79 = arith.constant 32 : index
    %c0_80 = arith.constant 0 : index
    %53 = vector.load %arg2[%c0_78, %c32_79, %c0_80] : memref<8x80x2xf32, #tpu.memory_space<vmem>>, vector<8x16x2xf32>
    %54 = tpu.concatenate %52, %49, %53 in 2 : vector<8x16x2xf32>, vector<8x16x16xf32>, vector<8x16x2xf32> -> vector<8x16x20xf32>
    %c0_81 = arith.constant 0 : index
    %c42 = arith.constant 42 : index
    %c0_82 = arith.constant 0 : index
    %55 = vector.load %arg4[%c0_81, %c42, %c0_82] : memref<8x100x20xf32, #tpu.memory_space<vmem>>, vector<8x16x20xf32>
    tpu.vector_store %arg4[%c0_81, %c42, %c0_82], %54 {strides = array<i32>} : memref<8x100x20xf32, #tpu.memory_space<vmem>>, vector<8x16x20xf32>,
    %c0_83 = arith.constant 0 : index
    %c48 = arith.constant 48 : index
    %c0_84 = arith.constant 0 : index
    %56 = vector.load %arg1[%c0_83, %c48, %c0_84] : memref<8x80x16xf32, #tpu.memory_space<vmem>>, vector<8x2x16xf32>
    %c0_85 = arith.constant 0 : index
    %c48_86 = arith.constant 48 : index
    %c0_87 = arith.constant 0 : index
    %57 = vector.load %arg1[%c0_85, %c48_86, %c0_87] : memref<8x80x16xf32, #tpu.memory_space<vmem>>, vector<8x2x1xf32>
    %58 = vector.shape_cast %57 : vector<8x2x1xf32> to vector<8x2x1xf32>
    %59 = vector.broadcast %58 : vector<8x2x1xf32> to vector<8x2x2xf32>
    %c0_88 = arith.constant 0 : index
    %c48_89 = arith.constant 48 : index
    %c0_90 = arith.constant 0 : index
    %60 = vector.load %arg2[%c0_88, %c48_89, %c0_90] : memref<8x80x2xf32, #tpu.memory_space<vmem>>, vector<8x2x2xf32>
    %61 = tpu.concatenate %59, %56, %60 in 2 : vector<8x2x2xf32>, vector<8x2x16xf32>, vector<8x2x2xf32> -> vector<8x2x20xf32>
    %c0_91 = arith.constant 0 : index
    %c58 = arith.constant 58 : index
    %c0_92 = arith.constant 0 : index
    %62 = vector.load %arg4[%c0_91, %c58, %c0_92] : memref<8x100x20xf32, #tpu.memory_space<vmem>>, vector<8x2x20xf32>
    tpu.vector_store %arg4[%c0_91, %c58, %c0_92], %61 {strides = array<i32>} : memref<8x100x20xf32, #tpu.memory_space<vmem>>, vector<8x2x20xf32>,
    %c0_93 = arith.constant 0 : index
    %c46 = arith.constant 46 : index
    %c0_94 = arith.constant 0 : index
    %63 = vector.load %arg1[%c0_93, %c46, %c0_94] : memref<8x80x16xf32, #tpu.memory_space<vmem>>, vector<8x2x16xf32>
    %c0_95 = arith.constant 0 : index
    %c46_96 = arith.constant 46 : index
    %c0_97 = arith.constant 0 : index
    %64 = vector.load %arg1[%c0_95, %c46_96, %c0_97] : memref<8x80x16xf32, #tpu.memory_space<vmem>>, vector<8x2x1xf32>
    %65 = vector.shape_cast %64 : vector<8x2x1xf32> to vector<8x2x1xf32>
    %66 = vector.broadcast %65 : vector<8x2x1xf32> to vector<8x2x2xf32>
    %c0_98 = arith.constant 0 : index
    %c46_99 = arith.constant 46 : index
    %c0_100 = arith.constant 0 : index
    %67 = vector.load %arg2[%c0_98, %c46_99, %c0_100] : memref<8x80x2xf32, #tpu.memory_space<vmem>>, vector<8x2x2xf32>
    %68 = tpu.concatenate %66, %63, %67 in 2 : vector<8x2x2xf32>, vector<8x2x16xf32>, vector<8x2x2xf32> -> vector<8x2x20xf32>
    %c0_101 = arith.constant 0 : index
    %c60 = arith.constant 60 : index
    %c0_102 = arith.constant 0 : index
    %69 = vector.load %arg4[%c0_101, %c60, %c0_102] : memref<8x100x20xf32, #tpu.memory_space<vmem>>, vector<8x2x20xf32>
    tpu.vector_store %arg4[%c0_101, %c60, %c0_102], %68 {strides = array<i32>} : memref<8x100x20xf32, #tpu.memory_space<vmem>>, vector<8x2x20xf32>,
    %c0_103 = arith.constant 0 : index
    %c48_104 = arith.constant 48 : index
    %c0_105 = arith.constant 0 : index
    %70 = vector.load %arg1[%c0_103, %c48_104, %c0_105] : memref<8x80x16xf32, #tpu.memory_space<vmem>>, vector<8x16x16xf32>
    %c0_106 = arith.constant 0 : index
    %c48_107 = arith.constant 48 : index
    %c0_108 = arith.constant 0 : index
    %71 = vector.load %arg1[%c0_106, %c48_107, %c0_108] : memref<8x80x16xf32, #tpu.memory_space<vmem>>, vector<8x16x1xf32>
    %72 = vector.shape_cast %71 : vector<8x16x1xf32> to vector<8x16x1xf32>
    %73 = vector.broadcast %72 : vector<8x16x1xf32> to vector<8x16x2xf32>
    %c0_109 = arith.constant 0 : index
    %c48_110 = arith.constant 48 : index
    %c0_111 = arith.constant 0 : index
    %74 = vector.load %arg2[%c0_109, %c48_110, %c0_111] : memref<8x80x2xf32, #tpu.memory_space<vmem>>, vector<8x16x2xf32>
    %75 = tpu.concatenate %73, %70, %74 in 2 : vector<8x16x2xf32>, vector<8x16x16xf32>, vector<8x16x2xf32> -> vector<8x16x20xf32>
    %c0_112 = arith.constant 0 : index
    %c62_113 = arith.constant 62 : index
    %c0_114 = arith.constant 0 : index
    %76 = vector.load %arg4[%c0_112, %c62_113, %c0_114] : memref<8x100x20xf32, #tpu.memory_space<vmem>>, vector<8x16x20xf32>
    tpu.vector_store %arg4[%c0_112, %c62_113, %c0_114], %75 {strides = array<i32>} : memref<8x100x20xf32, #tpu.memory_space<vmem>>, vector<8x16x20xf32>,
    %c0_115 = arith.constant 0 : index
    %c0_116 = arith.constant 0 : index
    %c0_117 = arith.constant 0 : index
    %77 = vector.load %arg1[%c0_115, %c0_116, %c0_117] : memref<8x80x16xf32, #tpu.memory_space<vmem>>, vector<8x2x16xf32>
    %c0_118 = arith.constant 0 : index
    %c0_119 = arith.constant 0 : index
    %c0_120 = arith.constant 0 : index
    %78 = vector.load %arg1[%c0_118, %c0_119, %c0_120] : memref<8x80x16xf32, #tpu.memory_space<vmem>>, vector<8x2x1xf32>
    %79 = vector.shape_cast %78 : vector<8x2x1xf32> to vector<8x2x1xf32>
    %80 = vector.broadcast %79 : vector<8x2x1xf32> to vector<8x2x2xf32>
    %c0_121 = arith.constant 0 : index
    %c0_122 = arith.constant 0 : index
    %c0_123 = arith.constant 0 : index
    %81 = vector.load %arg2[%c0_121, %c0_122, %c0_123] : memref<8x80x2xf32, #tpu.memory_space<vmem>>, vector<8x2x2xf32>
    %82 = tpu.concatenate %80, %77, %81 in 2 : vector<8x2x2xf32>, vector<8x2x16xf32>, vector<8x2x2xf32> -> vector<8x2x20xf32>
    %c0_124 = arith.constant 0 : index
    %c78 = arith.constant 78 : index
    %c0_125 = arith.constant 0 : index
    %83 = vector.load %arg4[%c0_124, %c78, %c0_125] : memref<8x100x20xf32, #tpu.memory_space<vmem>>, vector<8x2x20xf32>
    tpu.vector_store %arg4[%c0_124, %c78, %c0_125], %82 {strides = array<i32>} : memref<8x100x20xf32, #tpu.memory_space<vmem>>, vector<8x2x20xf32>,
    %c0_126 = arith.constant 0 : index
    %c0_127 = arith.constant 0 : index
    %c14_128 = arith.constant 14 : index
    %84 = vector.load %arg1[%c0_126, %c0_127, %c14_128] : memref<8x80x16xf32, #tpu.memory_space<vmem>>, vector<8x16x2xf32>
    %c0_129 = arith.constant 0 : index
    %c64 = arith.constant 64 : index
    %c0_130 = arith.constant 0 : index
    %85 = vector.load %arg1[%c0_129, %c64, %c0_130] : memref<8x80x16xf32, #tpu.memory_space<vmem>>, vector<8x16x16xf32>
    %c0_131 = arith.constant 0 : index
    %c64_132 = arith.constant 64 : index
    %c0_133 = arith.constant 0 : index
    %86 = vector.load %arg2[%c0_131, %c64_132, %c0_133] : memref<8x80x2xf32, #tpu.memory_space<vmem>>, vector<8x16x2xf32>
    %87 = tpu.concatenate %84, %85, %86 in 2 : vector<8x16x2xf32>, vector<8x16x16xf32>, vector<8x16x2xf32> -> vector<8x16x20xf32>
    %c0_134 = arith.constant 0 : index
    %c0_135 = arith.constant 0 : index
    %c0_136 = arith.constant 0 : index
    %88 = vector.load %arg3[%c0_134, %c0_135, %c0_136] : memref<8x4x20xf32, #tpu.memory_space<vmem>>, vector<8x2x20xf32>
    %c0_137 = arith.constant 0 : index
    %c80 = arith.constant 80 : index
    %c0_138 = arith.constant 0 : index
    %89 = vector.load %arg4[%c0_137, %c80, %c0_138] : memref<8x100x20xf32, #tpu.memory_space<vmem>>, vector<8x2x20xf32>
    tpu.vector_store %arg4[%c0_137, %c80, %c0_138], %88 {strides = array<i32>} : memref<8x100x20xf32, #tpu.memory_space<vmem>>, vector<8x2x20xf32>,
    %c0_139 = arith.constant 0 : index
    %c82 = arith.constant 82 : index
    %c0_140 = arith.constant 0 : index
    %90 = vector.load %arg4[%c0_139, %c82, %c0_140] : memref<8x100x20xf32, #tpu.memory_space<vmem>>, vector<8x16x20xf32>
    tpu.vector_store %arg4[%c0_139, %c82, %c0_140], %87 {strides = array<i32>} : memref<8x100x20xf32, #tpu.memory_space<vmem>>, vector<8x16x20xf32>,
    %c0_141 = arith.constant 0 : index
    %c2_142 = arith.constant 2 : index
    %c0_143 = arith.constant 0 : index
    %91 = vector.load %arg3[%c0_141, %c2_142, %c0_143] : memref<8x4x20xf32, #tpu.memory_space<vmem>>, vector<8x2x20xf32>
    %c0_144 = arith.constant 0 : index
    %c98 = arith.constant 98 : index
    %c0_145 = arith.constant 0 : index
    %92 = vector.load %arg4[%c0_144, %c98, %c0_145] : memref<8x100x20xf32, #tpu.memory_space<vmem>>, vector<8x2x20xf32>
    tpu.vector_store %arg4[%c0_144, %c98, %c0_145], %91 {strides = array<i32>} : memref<8x100x20xf32, #tpu.memory_space<vmem>>, vector<8x2x20xf32>,
    return
  }
  func.func @transform_0(%arg0: i32) -> (i32, i32, i32) {
    %c0_i32 = arith.constant 0 : i32
    %c0_i32_0 = arith.constant 0 : i32
    %c0_i32_1 = arith.constant 0 : i32
    return %arg0, %c0_i32, %c0_i32_0 : i32, i32, i32
  }
  func.func @transform_1(%arg0: i32) -> (i32, i32, i32) {
    %c0_i32 = arith.constant 0 : i32
    %c0_i32_0 = arith.constant 0 : i32
    %c0_i32_1 = arith.constant 0 : i32
    return %arg0, %c0_i32, %c0_i32_0 : i32, i32, i32
  }
  func.func @transform_2(%arg0: i32) -> (i32, i32, i32) {
    %c0_i32 = arith.constant 0 : i32
    %c0_i32_0 = arith.constant 0 : i32
    %c0_i32_1 = arith.constant 0 : i32
    return %arg0, %c0_i32, %c0_i32_0 : i32, i32, i32
  }
  func.func @transform_3(%arg0: i32) -> (i32, i32, i32) {
    %c0_i32 = arith.constant 0 : i32
    %c0_i32_0 = arith.constant 0 : i32
    %c0_i32_1 = arith.constant 0 : i32
    return %arg0, %c0_i32, %c0_i32_0 : i32, i32, i32
  }
}

</mosaic_0001>

<llo_original>
// kernel: tpu_custom_call.1
$region0: #{tpu_custom_call.1}
  #allocation0 [shape = 'u32[]', space=smem, size = 0x4, offset = 0x4, fixed_abs, tag = 'smem constant byte address 0x4 - core index']
  #allocation1 [shape = 'u32[72,128]{1,0:T(1,128)}', space=vmem, size = 0x9000, scoped, tag = 'internal scratch']
  %s0 = inlined_call_operand.vmem [shape: f32[8,80,16], index: 0, kind: input, shape index: {}]
  %s1 = inlined_call_operand.vmem [shape: f32[8,80,2], index: 1, kind: input, shape index: {}]
  %s2 = inlined_call_operand.vmem [shape: f32[8,4,20], index: 2, kind: input, shape index: {}]
  %s3 = inlined_call_operand.vmem [shape: f32[8,100,20], index: 3, kind: output, shape index: {}]
  %s4 = sld [smem:[#allocation0]]
  $region22: #{tpu_custom_call.1} parent=0
    _
  %s6 = ssub.s32 1, %s4
  %s7 = scalar_select 0, %s6, %s4
  // Predicated region
  $region2: #{tpu_custom_call.1} parent=0 // pred_check
    _
  $region3: #{tpu_custom_call.1} parent=0 // pred_check_branch
    %9 = sbr.rel (0) target = $region5
  $region4: #{tpu_custom_call.1} parent=0 // pred_region
    _
  $region5: #{tpu_custom_call.1} parent=0 // pred_fallthru
    _
  // Predicated region
  $region6: #{tpu_custom_call.1} parent=0 // pred_check
    _
  $region7: #{tpu_custom_call.1} parent=0 // pred_check_branch
    %11 = sbr.rel (0) target = $region9
  $region8: #{tpu_custom_call.1} parent=0 // pred_region
    _
  $region9: #{tpu_custom_call.1} parent=0 // pred_fallthru
    _
  // Predicated region
  $region10: #{tpu_custom_call.1} parent=0 // pred_check
    _
  $region11: #{tpu_custom_call.1} parent=0 // pred_check_branch
    %13 = sbr.rel (0) target = $region13
  $region12: #{tpu_custom_call.1} parent=0 // pred_region
    _
  $region13: #{tpu_custom_call.1} parent=0 // pred_fallthru
    _
  %v14 = vld [vmem:[%s0 + $0x3e] sm:$0x3]
  %v15 = vld [vmem:[%s0 + $0x8e] sm:$0x3]
  %v16 = vld [vmem:[%s0 + $0xde] sm:$0x3]
  %v17 = vld [vmem:[%s0 + $0x12e] sm:$0x3]
  %v18 = vld [vmem:[%s0 + $0x17e] sm:$0x3]
  %v19 = vld [vmem:[%s0 + $0x1ce] sm:$0x3]
  %v20 = vld [vmem:[%s0 + $0x21e] sm:$0x3]
  %v21 = vld [vmem:[%s0 + $0x26e] sm:$0x3]
  %23 = vset.pattern.permute.xlu0 0
  %24 = vperm.xlu0 %23, %v14
  %v25 = vpop.permute.xlu0 %24
  %28 = vset.pattern.permute.xlu0 0
  %29 = vperm.xlu0 %28, %v15
  %v30 = vpop.permute.xlu0 %29
  %33 = vset.pattern.permute.xlu0 0
  %34 = vperm.xlu0 %33, %v16
  %v35 = vpop.permute.xlu0 %34
  %38 = vset.pattern.permute.xlu0 0
  %39 = vperm.xlu0 %38, %v17
  %v40 = vpop.permute.xlu0 %39
  %43 = vset.pattern.permute.xlu0 0
  %44 = vperm.xlu0 %43, %v18
  %v45 = vpop.permute.xlu0 %44
  %48 = vset.pattern.permute.xlu0 0
  %49 = vperm.xlu0 %48, %v19
  %v50 = vpop.permute.xlu0 %49
  %53 = vset.pattern.permute.xlu0 0
  %54 = vperm.xlu0 %53, %v20
  %v55 = vpop.permute.xlu0 %54
  %58 = vset.pattern.permute.xlu0 0
  %59 = vperm.xlu0 %58, %v21
  %v60 = vpop.permute.xlu0 %59
  %v62 = vld [vmem:[%s1 + $0x3e] sm:$0x3]
  %v63 = vld [vmem:[%s1 + $0x8e] sm:$0x3]
  %v64 = vld [vmem:[%s1 + $0xde] sm:$0x3]
  %v65 = vld [vmem:[%s1 + $0x12e] sm:$0x3]
  %v66 = vld [vmem:[%s1 + $0x17e] sm:$0x3]
  %v67 = vld [vmem:[%s1 + $0x1ce] sm:$0x3]
  %v68 = vld [vmem:[%s1 + $0x21e] sm:$0x3]
  %v69 = vld [vmem:[%s1 + $0x26e] sm:$0x3]
  %70 = vrot.lane.b32.xlu0 %v14, 2
  %v71 = vpop.permute.xlu0 %70
  %72 = vrot.lane.b32.xlu0 %v15, 2
  %v73 = vpop.permute.xlu0 %72
  %74 = vrot.lane.b32.xlu0 %v16, 2
  %v75 = vpop.permute.xlu0 %74
  %76 = vrot.lane.b32.xlu0 %v17, 2
  %v77 = vpop.permute.xlu0 %76
  %78 = vrot.lane.b32.xlu0 %v18, 2
  %v79 = vpop.permute.xlu0 %78
  %80 = vrot.lane.b32.xlu0 %v19, 2
  %v81 = vpop.permute.xlu0 %80
  %82 = vrot.lane.b32.xlu0 %v20, 2
  %v83 = vpop.permute.xlu0 %82
  %84 = vrot.lane.b32.xlu0 %v21, 2
  %v85 = vpop.permute.xlu0 %84
  %102 = vrot.lane.b32.xlu0 %v62, 18
  %v103 = vpop.permute.xlu0 %102
  %104 = vrot.lane.b32.xlu0 %v63, 18
  %v105 = vpop.permute.xlu0 %104
  %106 = vrot.lane.b32.xlu0 %v64, 18
  %v107 = vpop.permute.xlu0 %106
  %108 = vrot.lane.b32.xlu0 %v65, 18
  %v109 = vpop.permute.xlu0 %108
  %110 = vrot.lane.b32.xlu0 %v66, 18
  %v111 = vpop.permute.xlu0 %110
  %112 = vrot.lane.b32.xlu0 %v67, 18
  %v113 = vpop.permute.xlu0 %112
  %114 = vrot.lane.b32.xlu0 %v68, 18
  %v115 = vpop.permute.xlu0 %114
  %116 = vrot.lane.b32.xlu0 %v69, 18
  %v117 = vpop.permute.xlu0 %116
  %vm126 = vcmask 15360
  %v127 = vsel %vm126, %v25, %v71
  %v128 = vsel %vm126, %v30, %v73
  %v129 = vsel %vm126, %v35, %v75
  %v130 = vsel %vm126, %v40, %v77
  %v131 = vsel %vm126, %v45, %v79
  %v132 = vsel %vm126, %v50, %v81
  %v133 = vsel %vm126, %v55, %v83
  %v134 = vsel %vm126, %v60, %v85
  %vm135 = vcmask 146432
  %v136 = vsel %vm135, %v127, %v103
  %v137 = vsel %vm135, %v128, %v105
  %v138 = vsel %vm135, %v129, %v107
  %v139 = vsel %vm135, %v130, %v109
  %v140 = vsel %vm135, %v131, %v111
  %v141 = vsel %vm135, %v132, %v113
  %v142 = vsel %vm135, %v133, %v115
  %v143 = vsel %vm135, %v134, %v117
  %vm144 = vcmask 156672
  %145 = vst.msk [vmem:[%s3] sm:$0x3] %vm144, %v136
  %146 = vst.msk [vmem:[%s3 + $0x68] sm:$0x3] %vm144, %v137
  %147 = vst.msk [vmem:[%s3 + $0xd0] sm:$0x3] %vm144, %v138
  %148 = vst.msk [vmem:[%s3 + $0x138] sm:$0x3] %vm144, %v139
  %149 = vst.msk [vmem:[%s3 + $0x1a0] sm:$0x3] %vm144, %v140
  %150 = vst.msk [vmem:[%s3 + $0x208] sm:$0x3] %vm144, %v141
  %151 = vst.msk [vmem:[%s3 + $0x270] sm:$0x3] %vm144, %v142
  %152 = vst.msk [vmem:[%s3 + $0x2d8] sm:$0x3] %vm144, %v143
  %v153 = vld [vmem:[%s0] sm:$0xff]
  %v154 = vld [vmem:[%s0 + $0x8] sm:$0xff]
  %v155 = vld [vmem:[%s0 + $0x50] sm:$0xff]
  %v156 = vld [vmem:[%s0 + $0x58] sm:$0xff]
  %v157 = vld [vmem:[%s0 + $0xa0] sm:$0xff]
  %v158 = vld [vmem:[%s0 + $0xa8] sm:$0xff]
  %v159 = vld [vmem:[%s0 + $0xf0] sm:$0xff]
  %v160 = vld [vmem:[%s0 + $0xf8] sm:$0xff]
  %v161 = vld [vmem:[%s0 + $0x140] sm:$0xff]
  %v162 = vld [vmem:[%s0 + $0x148] sm:$0xff]
  %v163 = vld [vmem:[%s0 + $0x190] sm:$0xff]
  %v164 = vld [vmem:[%s0 + $0x198] sm:$0xff]
  %v165 = vld [vmem:[%s0 + $0x1e0] sm:$0xff]
  %v166 = vld [vmem:[%s0 + $0x1e8] sm:$0xff]
  %v167 = vld [vmem:[%s0 + $0x230] sm:$0xff]
  %v168 = vld [vmem:[%s0 + $0x238] sm:$0xff]
  %170 = vset.pattern.permute.xlu0 0
  %171 = vperm.xlu0 %170, %v153
  %v172 = vpop.permute.xlu0 %171
  %175 = vset.pattern.permute.xlu0 0
  %176 = vperm.xlu0 %175, %v154
  %v177 = vpop.permute.xlu0 %176
  %180 = vset.pattern.permute.xlu0 0
  %181 = vperm.xlu0 %180, %v155
  %v182 = vpop.permute.xlu0 %181
  %185 = vset.pattern.permute.xlu0 0
  %186 = vperm.xlu0 %185, %v156
  %v187 = vpop.permute.xlu0 %186
  %190 = vset.pattern.permute.xlu0 0
  %191 = vperm.xlu0 %190, %v157
  %v192 = vpop.permute.xlu0 %191
  %195 = vset.pattern.permute.xlu0 0
  %196 = vperm.xlu0 %195, %v158
  %v197 = vpop.permute.xlu0 %196
  %200 = vset.pattern.permute.xlu0 0
  %201 = vperm.xlu0 %200, %v159
  %v202 = vpop.permute.xlu0 %201
  %205 = vset.pattern.permute.xlu0 0
  %206 = vperm.xlu0 %205, %v160
  %v207 = vpop.permute.xlu0 %206
  %210 = vset.pattern.permute.xlu0 0
  %211 = vperm.xlu0 %210, %v161
  %v212 = vpop.permute.xlu0 %211
  %215 = vset.pattern.permute.xlu0 0
  %216 = vperm.xlu0 %215, %v162
  %v217 = vpop.permute.xlu0 %216
  %220 = vset.pattern.permute.xlu0 0
  %221 = vperm.xlu0 %220, %v163
  %v222 = vpop.permute.xlu0 %221
  %225 = vset.pattern.permute.xlu0 0
  %226 = vperm.xlu0 %225, %v164
  %v227 = vpop.permute.xlu0 %226
  %230 = vset.pattern.permute.xlu0 0
  %231 = vperm.xlu0 %230, %v165
  %v232 = vpop.permute.xlu0 %231
  %235 = vset.pattern.permute.xlu0 0
  %236 = vperm.xlu0 %235, %v166
  %v237 = vpop.permute.xlu0 %236
  %240 = vset.pattern.permute.xlu0 0
  %241 = vperm.xlu0 %240, %v167
  %v242 = vpop.permute.xlu0 %241
  %245 = vset.pattern.permute.xlu0 0
  %246 = vperm.xlu0 %245, %v168
  %v247 = vpop.permute.xlu0 %246
  %v249 = vld [vmem:[%s1] sm:$0xff]
  %v250 = vld [vmem:[%s1 + $0x8] sm:$0xff]
  %v251 = vld [vmem:[%s1 + $0x50] sm:$0xff]
  %v252 = vld [vmem:[%s1 + $0x58] sm:$0xff]
  %v253 = vld [vmem:[%s1 + $0xa0] sm:$0xff]
  %v254 = vld [vmem:[%s1 + $0xa8] sm:$0xff]
  %v255 = vld [vmem:[%s1 + $0xf0] sm:$0xff]
  %v256 = vld [vmem:[%s1 + $0xf8] sm:$0xff]
  %v257 = vld [vmem:[%s1 + $0x140] sm:$0xff]
  %v258 = vld [vmem:[%s1 + $0x148] sm:$0xff]
  %v259 = vld [vmem:[%s1 + $0x190] sm:$0xff]
  %v260 = vld [vmem:[%s1 + $0x198] sm:$0xff]
  %v261 = vld [vmem:[%s1 + $0x1e0] sm:$0xff]
  %v262 = vld [vmem:[%s1 + $0x1e8] sm:$0xff]
  %v263 = vld [vmem:[%s1 + $0x230] sm:$0xff]
  %v264 = vld [vmem:[%s1 + $0x238] sm:$0xff]
  %265 = vrot.lane.b32.xlu0 %v153, 2
  %v266 = vpop.permute.xlu0 %265
  %267 = vrot.lane.b32.xlu0 %v154, 2
  %v268 = vpop.permute.xlu0 %267
  %269 = vrot.lane.b32.xlu0 %v155, 2
  %v270 = vpop.permute.xlu0 %269
  %271 = vrot.lane.b32.xlu0 %v156, 2
  %v272 = vpop.permute.xlu0 %271
  %273 = vrot.lane.b32.xlu0 %v157, 2
  %v274 = vpop.permute.xlu0 %273
  %275 = vrot.lane.b32.xlu0 %v158, 2
  %v276 = vpop.permute.xlu0 %275
  %277 = vrot.lane.b32.xlu0 %v159, 2
  %v278 = vpop.permute.xlu0 %277
  %279 = vrot.lane.b32.xlu0 %v160, 2
  %v280 = vpop.permute.xlu0 %279
  %281 = vrot.lane.b32.xlu0 %v161, 2
  %v282 = vpop.permute.xlu0 %281
  %283 = vrot.lane.b32.xlu0 %v162, 2
  %v284 = vpop.permute.xlu0 %283
  %285 = vrot.lane.b32.xlu0 %v163, 2
  %v286 = vpop.permute.xlu0 %285
  %287 = vrot.lane.b32.xlu0 %v164, 2
  %v288 = vpop.permute.xlu0 %287
  %289 = vrot.lane.b32.xlu0 %v165, 2
  %v290 = vpop.permute.xlu0 %289
  %291 = vrot.lane.b32.xlu0 %v166, 2
  %v292 = vpop.permute.xlu0 %291
  %293 = vrot.lane.b32.xlu0 %v167, 2
  %v294 = vpop.permute.xlu0 %293
  %295 = vrot.lane.b32.xlu0 %v168, 2
  %v296 = vpop.permute.xlu0 %295
  %329 = vrot.lane.b32.xlu0 %v249, 18
  %v330 = vpop.permute.xlu0 %329
  %331 = vrot.lane.b32.xlu0 %v250, 18
  %v332 = vpop.permute.xlu0 %331
  %333 = vrot.lane.b32.xlu0 %v251, 18
  %v334 = vpop.permute.xlu0 %333
  %335 = vrot.lane.b32.xlu0 %v252, 18
  %v336 = vpop.permute.xlu0 %335
  %337 = vrot.lane.b32.xlu0 %v253, 18
  %v338 = vpop.permute.xlu0 %337
  %339 = vrot.lane.b32.xlu0 %v254, 18
  %v340 = vpop.permute.xlu0 %339
  %341 = vrot.lane.b32.xlu0 %v255, 18
  %v342 = vpop.permute.xlu0 %341
  %343 = vrot.lane.b32.xlu0 %v256, 18
  %v344 = vpop.permute.xlu0 %343
  %345 = vrot.lane.b32.xlu0 %v257, 18
  %v346 = vpop.permute.xlu0 %345
  %347 = vrot.lane.b32.xlu0 %v258, 18
  %v348 = vpop.permute.xlu0 %347
  %349 = vrot.lane.b32.xlu0 %v259, 18
  %v350 = vpop.permute.xlu0 %349
  %351 = vrot.lane.b32.xlu0 %v260, 18
  %v352 = vpop.permute.xlu0 %351
  %353 = vrot.lane.b32.xlu0 %v261, 18
  %v354 = vpop.permute.xlu0 %353
  %355 = vrot.lane.b32.xlu0 %v262, 18
  %v356 = vpop.permute.xlu0 %355
  %357 = vrot.lane.b32.xlu0 %v263, 18
  %v358 = vpop.permute.xlu0 %357
  %359 = vrot.lane.b32.xlu0 %v264, 18
  %v360 = vpop.permute.xlu0 %359
  %v377 = vsel %vm126, %v172, %v266
  %v378 = vsel %vm126, %v177, %v268
  %v379 = vsel %vm126, %v182, %v270
  %v380 = vsel %vm126, %v187, %v272
  %v381 = vsel %vm126, %v192, %v274
  %v382 = vsel %vm126, %v197, %v276
  %v383 = vsel %vm126, %v202, %v278
  %v384 = vsel %vm126, %v207, %v280
  %v385 = vsel %vm126, %v212, %v282
  %v386 = vsel %vm126, %v217, %v284
  %v387 = vsel %vm126, %v222, %v286
  %v388 = vsel %vm126, %v227, %v288
  %v389 = vsel %vm126, %v232, %v290
  %v390 = vsel %vm126, %v237, %v292
  %v391 = vsel %vm126, %v242, %v294
  %v392 = vsel %vm126, %v247, %v296
  %v393 = vsel %vm135, %v377, %v330
  %v394 = vsel %vm135, %v378, %v332
  %v395 = vsel %vm135, %v379, %v334
  %v396 = vsel %vm135, %v380, %v336
  %v397 = vsel %vm135, %v381, %v338
  %v398 = vsel %vm135, %v382, %v340
  %v399 = vsel %vm135, %v383, %v342
  %v400 = vsel %vm135, %v384, %v344
  %v401 = vsel %vm135, %v385, %v346
  %v402 = vsel %vm135, %v386, %v348
  %v403 = vsel %vm135, %v387, %v350
  %v404 = vsel %vm135, %v388, %v352
  %v405 = vsel %vm135, %v389, %v354
  %v406 = vsel %vm135, %v390, %v356
  %v407 = vsel %vm135, %v391, %v358
  %v408 = vsel %vm135, %v392, %v360
  %vm409 = vcmask 162816
  %410 = vst.msk [vmem:[%s3 + $0x2] sm:$0xff] %vm409, %v393
  %411 = vst.msk [vmem:[%s3 + $0xa] sm:$0xff] %vm409, %v394
  %412 = vst.msk [vmem:[%s3 + $0x6a] sm:$0xff] %vm409, %v395
  %413 = vst.msk [vmem:[%s3 + $0x72] sm:$0xff] %vm409, %v396
  %414 = vst.msk [vmem:[%s3 + $0xd2] sm:$0xff] %vm409, %v397
  %415 = vst.msk [vmem:[%s3 + $0xda] sm:$0xff] %vm409, %v398
  %416 = vst.msk [vmem:[%s3 + $0x13a] sm:$0xff] %vm409, %v399
  %417 = vst.msk [vmem:[%s3 + $0x142] sm:$0xff] %vm409, %v400
  %418 = vst.msk [vmem:[%s3 + $0x1a2] sm:$0xff] %vm409, %v401
  %419 = vst.msk [vmem:[%s3 + $0x1aa] sm:$0xff] %vm409, %v402
  %420 = vst.msk [vmem:[%s3 + $0x20a] sm:$0xff] %vm409, %v403
  %421 = vst.msk [vmem:[%s3 + $0x212] sm:$0xff] %vm409, %v404
  %422 = vst.msk [vmem:[%s3 + $0x272] sm:$0xff] %vm409, %v405
  %423 = vst.msk [vmem:[%s3 + $0x27a] sm:$0xff] %vm409, %v406
  %424 = vst.msk [vmem:[%s3 + $0x2da] sm:$0xff] %vm409, %v407
  %425 = vst.msk [vmem:[%s3 + $0x2e2] sm:$0xff] %vm409, %v408
  %v426 = vld [vmem:[%s0 + $0x10] sm:$0x3]
  %v427 = vld [vmem:[%s0 + $0x60] sm:$0x3]
  %v428 = vld [vmem:[%s0 + $0xb0] sm:$0x3]
  %v429 = vld [vmem:[%s0 + $0x100] sm:$0x3]
  %v430 = vld [vmem:[%s0 + $0x150] sm:$0x3]
  %v431 = vld [vmem:[%s0 + $0x1a0] sm:$0x3]
  %v432 = vld [vmem:[%s0 + $0x1f0] sm:$0x3]
  %v433 = vld [vmem:[%s0 + $0x240] sm:$0x3]
  %435 = vset.pattern.permute.xlu0 0
  %436 = vperm.xlu0 %435, %v426
  %v437 = vpop.permute.xlu0 %436
  %440 = vset.pattern.permute.xlu0 0
  %441 = vperm.xlu0 %440, %v427
  %v442 = vpop.permute.xlu0 %441
  %445 = vset.pattern.permute.xlu0 0
  %446 = vperm.xlu0 %445, %v428
  %v447 = vpop.permute.xlu0 %446
  %450 = vset.pattern.permute.xlu0 0
  %451 = vperm.xlu0 %450, %v429
  %v452 = vpop.permute.xlu0 %451
  %455 = vset.pattern.permute.xlu0 0
  %456 = vperm.xlu0 %455, %v430
  %v457 = vpop.permute.xlu0 %456
  %460 = vset.pattern.permute.xlu0 0
  %461 = vperm.xlu0 %460, %v431
  %v462 = vpop.permute.xlu0 %461
  %465 = vset.pattern.permute.xlu0 0
  %466 = vperm.xlu0 %465, %v432
  %v467 = vpop.permute.xlu0 %466
  %470 = vset.pattern.permute.xlu0 0
  %471 = vperm.xlu0 %470, %v433
  %v472 = vpop.permute.xlu0 %471
  %v474 = vld [vmem:[%s1 + $0x10] sm:$0x3]
  %v475 = vld [vmem:[%s1 + $0x60] sm:$0x3]
  %v476 = vld [vmem:[%s1 + $0xb0] sm:$0x3]
  %v477 = vld [vmem:[%s1 + $0x100] sm:$0x3]
  %v478 = vld [vmem:[%s1 + $0x150] sm:$0x3]
  %v479 = vld [vmem:[%s1 + $0x1a0] sm:$0x3]
  %v480 = vld [vmem:[%s1 + $0x1f0] sm:$0x3]
  %v481 = vld [vmem:[%s1 + $0x240] sm:$0x3]
  %482 = vrot.lane.b32.xlu0 %v426, 2
  %v483 = vpop.permute.xlu0 %482
  %484 = vrot.lane.b32.xlu0 %v427, 2
  %v485 = vpop.permute.xlu0 %484
  %486 = vrot.lane.b32.xlu0 %v428, 2
  %v487 = vpop.permute.xlu0 %486
  %488 = vrot.lane.b32.xlu0 %v429, 2
  %v489 = vpop.permute.xlu0 %488
  %490 = vrot.lane.b32.xlu0 %v430, 2
  %v491 = vpop.permute.xlu0 %490
  %492 = vrot.lane.b32.xlu0 %v431, 2
  %v493 = vpop.permute.xlu0 %492
  %494 = vrot.lane.b32.xlu0 %v432, 2
  %v495 = vpop.permute.xlu0 %494
  %496 = vrot.lane.b32.xlu0 %v433, 2
  %v497 = vpop.permute.xlu0 %496
  %514 = vrot.lane.b32.xlu0 %v474, 18
  %v515 = vpop.permute.xlu0 %514
  %516 = vrot.lane.b32.xlu0 %v475, 18
  %v517 = vpop.permute.xlu0 %516
  %518 = vrot.lane.b32.xlu0 %v476, 18
  %v519 = vpop.permute.xlu0 %518
  %520 = vrot.lane.b32.xlu0 %v477, 18
  %v521 = vpop.permute.xlu0 %520
  %522 = vrot.lane.b32.xlu0 %v478, 18
  %v523 = vpop.permute.xlu0 %522
  %524 = vrot.lane.b32.xlu0 %v479, 18
  %v525 = vpop.permute.xlu0 %524
  %526 = vrot.lane.b32.xlu0 %v480, 18
  %v527 = vpop.permute.xlu0 %526
  %528 = vrot.lane.b32.xlu0 %v481, 18
  %v529 = vpop.permute.xlu0 %528
  %v538 = vsel %vm126, %v437, %v483
  %v539 = vsel %vm126, %v442, %v485
  %v540 = vsel %vm126, %v447, %v487
  %v541 = vsel %vm126, %v452, %v489
  %v542 = vsel %vm126, %v457, %v491
  %v543 = vsel %vm126, %v462, %v493
  %v544 = vsel %vm126, %v467, %v495
  %v545 = vsel %vm126, %v472, %v497
  %v546 = vsel %vm135, %v538, %v515
  %v547 = vsel %vm135, %v539, %v517
  %v548 = vsel %vm135, %v540, %v519
  %v549 = vsel %vm135, %v541, %v521
  %v550 = vsel %vm135, %v542, %v523
  %v551 = vsel %vm135, %v543, %v525
  %v552 = vsel %vm135, %v544, %v527
  %v553 = vsel %vm135, %v545, %v529
  %554 = vst.msk [vmem:[%s3 + $0x12] sm:$0x3] %vm144, %v546
  %555 = vst.msk [vmem:[%s3 + $0x7a] sm:$0x3] %vm144, %v547
  %556 = vst.msk [vmem:[%s3 + $0xe2] sm:$0x3] %vm144, %v548
  %557 = vst.msk [vmem:[%s3 + $0x14a] sm:$0x3] %vm144, %v549
  %558 = vst.msk [vmem:[%s3 + $0x1b2] sm:$0x3] %vm144, %v550
  %559 = vst.msk [vmem:[%s3 + $0x21a] sm:$0x3] %vm144, %v551
  %560 = vst.msk [vmem:[%s3 + $0x282] sm:$0x3] %vm144, %v552
  %561 = vst.msk [vmem:[%s3 + $0x2ea] sm:$0x3] %vm144, %v553
  %v562 = vld [vmem:[%s0 + $0xe] sm:$0x3]
  %v563 = vld [vmem:[%s0 + $0x5e] sm:$0x3]
  %v564 = vld [vmem:[%s0 + $0xae] sm:$0x3]
  %v565 = vld [vmem:[%s0 + $0xfe] sm:$0x3]
  %v566 = vld [vmem:[%s0 + $0x14e] sm:$0x3]
  %v567 = vld [vmem:[%s0 + $0x19e] sm:$0x3]
  %v568 = vld [vmem:[%s0 + $0x1ee] sm:$0x3]
  %v569 = vld [vmem:[%s0 + $0x23e] sm:$0x3]
  %571 = vset.pattern.permute.xlu0 0
  %572 = vperm.xlu0 %571, %v562
  %v573 = vpop.permute.xlu0 %572
  %576 = vset.pattern.permute.xlu0 0
  %577 = vperm.xlu0 %576, %v563
  %v578 = vpop.permute.xlu0 %577
  %581 = vset.pattern.permute.xlu0 0
  %582 = vperm.xlu0 %581, %v564
  %v583 = vpop.permute.xlu0 %582
  %586 = vset.pattern.permute.xlu0 0
  %587 = vperm.xlu0 %586, %v565
  %v588 = vpop.permute.xlu0 %587
  %591 = vset.pattern.permute.xlu0 0
  %592 = vperm.xlu0 %591, %v566
  %v593 = vpop.permute.xlu0 %592
  %596 = vset.pattern.permute.xlu0 0
  %597 = vperm.xlu0 %596, %v567
  %v598 = vpop.permute.xlu0 %597
  %601 = vset.pattern.permute.xlu0 0
  %602 = vperm.xlu0 %601, %v568
  %v603 = vpop.permute.xlu0 %602
  %606 = vset.pattern.permute.xlu0 0
  %607 = vperm.xlu0 %606, %v569
  %v608 = vpop.permute.xlu0 %607
  %v610 = vld [vmem:[%s1 + $0xe] sm:$0x3]
  %v611 = vld [vmem:[%s1 + $0x5e] sm:$0x3]
  %v612 = vld [vmem:[%s1 + $0xae] sm:$0x3]
  %v613 = vld [vmem:[%s1 + $0xfe] sm:$0x3]
  %v614 = vld [vmem:[%s1 + $0x14e] sm:$0x3]
  %v615 = vld [vmem:[%s1 + $0x19e] sm:$0x3]
  %v616 = vld [vmem:[%s1 + $0x1ee] sm:$0x3]
  %v617 = vld [vmem:[%s1 + $0x23e] sm:$0x3]
  %618 = vrot.lane.b32.xlu0 %v562, 2
  %v619 = vpop.permute.xlu0 %618
  %620 = vrot.lane.b32.xlu0 %v563, 2
  %v621 = vpop.permute.xlu0 %620
  %622 = vrot.lane.b32.xlu0 %v564, 2
  %v623 = vpop.permute.xlu0 %622
  %624 = vrot.lane.b32.xlu0 %v565, 2
  %v625 = vpop.permute.xlu0 %624
  %626 = vrot.lane.b32.xlu0 %v566, 2
  %v627 = vpop.permute.xlu0 %626
  %628 = vrot.lane.b32.xlu0 %v567, 2
  %v629 = vpop.permute.xlu0 %628
  %630 = vrot.lane.b32.xlu0 %v568, 2
  %v631 = vpop.permute.xlu0 %630
  %632 = vrot.lane.b32.xlu0 %v569, 2
  %v633 = vpop.permute.xlu0 %632
  %650 = vrot.lane.b32.xlu0 %v610, 18
  %v651 = vpop.permute.xlu0 %650
  %652 = vrot.lane.b32.xlu0 %v611, 18
  %v653 = vpop.permute.xlu0 %652
  %654 = vrot.lane.b32.xlu0 %v612, 18
  %v655 = vpop.permute.xlu0 %654
  %656 = vrot.lane.b32.xlu0 %v613, 18
  %v657 = vpop.permute.xlu0 %656
  %658 = vrot.lane.b32.xlu0 %v614, 18
  %v659 = vpop.permute.xlu0 %658
  %660 = vrot.lane.b32.xlu0 %v615, 18
  %v661 = vpop.permute.xlu0 %660
  %662 = vrot.lane.b32.xlu0 %v616, 18
  %v663 = vpop.permute.xlu0 %662
  %664 = vrot.lane.b32.xlu0 %v617, 18
  %v665 = vpop.permute.xlu0 %664
  %v674 = vsel %vm126, %v573, %v619
  %v675 = vsel %vm126, %v578, %v621
  %v676 = vsel %vm126, %v583, %v623
  %v677 = vsel %vm126, %v588, %v625
  %v678 = vsel %vm126, %v593, %v627
  %v679 = vsel %vm126, %v598, %v629
  %v680 = vsel %vm126, %v603, %v631
  %v681 = vsel %vm126, %v608, %v633
  %v682 = vsel %vm135, %v674, %v651
  %v683 = vsel %vm135, %v675, %v653
  %v684 = vsel %vm135, %v676, %v655
  %v685 = vsel %vm135, %v677, %v657
  %v686 = vsel %vm135, %v678, %v659
  %v687 = vsel %vm135, %v679, %v661
  %v688 = vsel %vm135, %v680, %v663
  %v689 = vsel %vm135, %v681, %v665
  %690 = vst.msk [vmem:[%s3 + $0x14] sm:$0x3] %vm144, %v682
  %691 = vst.msk [vmem:[%s3 + $0x7c] sm:$0x3] %vm144, %v683
  %692 = vst.msk [vmem:[%s3 + $0xe4] sm:$0x3] %vm144, %v684
  %693 = vst.msk [vmem:[%s3 + $0x14c] sm:$0x3] %vm144, %v685
  %694 = vst.msk [vmem:[%s3 + $0x1b4] sm:$0x3] %vm144, %v686
  %695 = vst.msk [vmem:[%s3 + $0x21c] sm:$0x3] %vm144, %v687
  %696 = vst.msk [vmem:[%s3 + $0x284] sm:$0x3] %vm144, %v688
  %697 = vst.msk [vmem:[%s3 + $0x2ec] sm:$0x3] %vm144, %v689
  %v698 = vld [vmem:[%s0 + $0x10] sm:$0xff]
  %v699 = vld [vmem:[%s0 + $0x18] sm:$0xff]
  %v700 = vld [vmem:[%s0 + $0x60] sm:$0xff]
  %v701 = vld [vmem:[%s0 + $0x68] sm:$0xff]
  %v702 = vld [vmem:[%s0 + $0xb0] sm:$0xff]
  %v703 = vld [vmem:[%s0 + $0xb8] sm:$0xff]
  %v704 = vld [vmem:[%s0 + $0x100] sm:$0xff]
  %v705 = vld [vmem:[%s0 + $0x108] sm:$0xff]
  %v706 = vld [vmem:[%s0 + $0x150] sm:$0xff]
  %v707 = vld [vmem:[%s0 + $0x158] sm:$0xff]
  %v708 = vld [vmem:[%s0 + $0x1a0] sm:$0xff]
  %v709 = vld [vmem:[%s0 + $0x1a8] sm:$0xff]
  %v710 = vld [vmem:[%s0 + $0x1f0] sm:$0xff]
  %v711 = vld [vmem:[%s0 + $0x1f8] sm:$0xff]
  %v712 = vld [vmem:[%s0 + $0x240] sm:$0xff]
  %v713 = vld [vmem:[%s0 + $0x248] sm:$0xff]
  %715 = vset.pattern.permute.xlu0 0
  %716 = vperm.xlu0 %715, %v698
  %v717 = vpop.permute.xlu0 %716
  %720 = vset.pattern.permute.xlu0 0
  %721 = vperm.xlu0 %720, %v699
  %v722 = vpop.permute.xlu0 %721
  %725 = vset.pattern.permute.xlu0 0
  %726 = vperm.xlu0 %725, %v700
  %v727 = vpop.permute.xlu0 %726
  %730 = vset.pattern.permute.xlu0 0
  %731 = vperm.xlu0 %730, %v701
  %v732 = vpop.permute.xlu0 %731
  %735 = vset.pattern.permute.xlu0 0
  %736 = vperm.xlu0 %735, %v702
  %v737 = vpop.permute.xlu0 %736
  %740 = vset.pattern.permute.xlu0 0
  %741 = vperm.xlu0 %740, %v703
  %v742 = vpop.permute.xlu0 %741
  %745 = vset.pattern.permute.xlu0 0
  %746 = vperm.xlu0 %745, %v704
  %v747 = vpop.permute.xlu0 %746
  %750 = vset.pattern.permute.xlu0 0
  %751 = vperm.xlu0 %750, %v705
  %v752 = vpop.permute.xlu0 %751
  %755 = vset.pattern.permute.xlu0 0
  %756 = vperm.xlu0 %755, %v706
  %v757 = vpop.permute.xlu0 %756
  %760 = vset.pattern.permute.xlu0 0
  %761 = vperm.xlu0 %760, %v707
  %v762 = vpop.permute.xlu0 %761
  %765 = vset.pattern.permute.xlu0 0
  %766 = vperm.xlu0 %765, %v708
  %v767 = vpop.permute.xlu0 %766
  %770 = vset.pattern.permute.xlu0 0
  %771 = vperm.xlu0 %770, %v709
  %v772 = vpop.permute.xlu0 %771
  %775 = vset.pattern.permute.xlu0 0
  %776 = vperm.xlu0 %775, %v710
  %v777 = vpop.permute.xlu0 %776
  %780 = vset.pattern.permute.xlu0 0
  %781 = vperm.xlu0 %780, %v711
  %v782 = vpop.permute.xlu0 %781
  %785 = vset.pattern.permute.xlu0 0
  %786 = vperm.xlu0 %785, %v712
  %v787 = vpop.permute.xlu0 %786
  %790 = vset.pattern.permute.xlu0 0
  %791 = vperm.xlu0 %790, %v713
  %v792 = vpop.permute.xlu0 %791
  %v794 = vld [vmem:[%s1 + $0x10] sm:$0xff]
  %v795 = vld [vmem:[%s1 + $0x18] sm:$0xff]
  %v796 = vld [vmem:[%s1 + $0x60] sm:$0xff]
  %v797 = vld [vmem:[%s1 + $0x68] sm:$0xff]
  %v798 = vld [vmem:[%s1 + $0xb0] sm:$0xff]
  %v799 = vld [vmem:[%s1 + $0xb8] sm:$0xff]
  %v800 = vld [vmem:[%s1 + $0x100] sm:$0xff]
  %v801 = vld [vmem:[%s1 + $0x108] sm:$0xff]
  %v802 = vld [vmem:[%s1 + $0x150] sm:$0xff]
  %v803 = vld [vmem:[%s1 + $0x158] sm:$0xff]
  %v804 = vld [vmem:[%s1 + $0x1a0] sm:$0xff]
  %v805 = vld [vmem:[%s1 + $0x1a8] sm:$0xff]
  %v806 = vld [vmem:[%s1 + $0x1f0] sm:$0xff]
  %v807 = vld [vmem:[%s1 + $0x1f8] sm:$0xff]
  %v808 = vld [vmem:[%s1 + $0x240] sm:$0xff]
  %v809 = vld [vmem:[%s1 + $0x248] sm:$0xff]
  %810 = vrot.lane.b32.xlu0 %v698, 2
  %v811 = vpop.permute.xlu0 %810
  %812 = vrot.lane.b32.xlu0 %v699, 2
  %v813 = vpop.permute.xlu0 %812
  %814 = vrot.lane.b32.xlu0 %v700, 2
  %v815 = vpop.permute.xlu0 %814
  %816 = vrot.lane.b32.xlu0 %v701, 2
  %v817 = vpop.permute.xlu0 %816
  %818 = vrot.lane.b32.xlu0 %v702, 2
  %v819 = vpop.permute.xlu0 %818
  %820 = vrot.lane.b32.xlu0 %v703, 2
  %v821 = vpop.permute.xlu0 %820
  %822 = vrot.lane.b32.xlu0 %v704, 2
  %v823 = vpop.permute.xlu0 %822
  %824 = vrot.lane.b32.xlu0 %v705, 2
  %v825 = vpop.permute.xlu0 %824
  %826 = vrot.lane.b32.xlu0 %v706, 2
  %v827 = vpop.permute.xlu0 %826
  %828 = vrot.lane.b32.xlu0 %v707, 2
  %v829 = vpop.permute.xlu0 %828
  %830 = vrot.lane.b32.xlu0 %v708, 2
  %v831 = vpop.permute.xlu0 %830
  %832 = vrot.lane.b32.xlu0 %v709, 2
  %v833 = vpop.permute.xlu0 %832
  %834 = vrot.lane.b32.xlu0 %v710, 2
  %v835 = vpop.permute.xlu0 %834
  %836 = vrot.lane.b32.xlu0 %v711, 2
  %v837 = vpop.permute.xlu0 %836
  %838 = vrot.lane.b32.xlu0 %v712, 2
  %v839 = vpop.permute.xlu0 %838
  %840 = vrot.lane.b32.xlu0 %v713, 2
  %v841 = vpop.permute.xlu0 %840
  %874 = vrot.lane.b32.xlu0 %v794, 18
  %v875 = vpop.permute.xlu0 %874
  %876 = vrot.lane.b32.xlu0 %v795, 18
  %v877 = vpop.permute.xlu0 %876
  %878 = vrot.lane.b32.xlu0 %v796, 18
  %v879 = vpop.permute.xlu0 %878
  %880 = vrot.lane.b32.xlu0 %v797, 18
  %v881 = vpop.permute.xlu0 %880
  %882 = vrot.lane.b32.xlu0 %v798, 18
  %v883 = vpop.permute.xlu0 %882
  %884 = vrot.lane.b32.xlu0 %v799, 18
  %v885 = vpop.permute.xlu0 %884
  %886 = vrot.lane.b32.xlu0 %v800, 18
  %v887 = vpop.permute.xlu0 %886
  %888 = vrot.lane.b32.xlu0 %v801, 18
  %v889 = vpop.permute.xlu0 %888
  %890 = vrot.lane.b32.xlu0 %v802, 18
  %v891 = vpop.permute.xlu0 %890
  %892 = vrot.lane.b32.xlu0 %v803, 18
  %v893 = vpop.permute.xlu0 %892
  %894 = vrot.lane.b32.xlu0 %v804, 18
  %v895 = vpop.permute.xlu0 %894
  %896 = vrot.lane.b32.xlu0 %v805, 18
  %v897 = vpop.permute.xlu0 %896
  %898 = vrot.lane.b32.xlu0 %v806, 18
  %v899 = vpop.permute.xlu0 %898
  %900 = vrot.lane.b32.xlu0 %v807, 18
  %v901 = vpop.permute.xlu0 %900
  %902 = vrot.lane.b32.xlu0 %v808, 18
  %v903 = vpop.permute.xlu0 %902
  %904 = vrot.lane.b32.xlu0 %v809, 18
  %v905 = vpop.permute.xlu0 %904
  %v922 = vsel %vm126, %v717, %v811
  %v923 = vsel %vm126, %v722, %v813
  %v924 = vsel %vm126, %v727, %v815
  %v925 = vsel %vm126, %v732, %v817
  %v926 = vsel %vm126, %v737, %v819
  %v927 = vsel %vm126, %v742, %v821
  %v928 = vsel %vm126, %v747, %v823
  %v929 = vsel %vm126, %v752, %v825
  %v930 = vsel %vm126, %v757, %v827
  %v931 = vsel %vm126, %v762, %v829
  %v932 = vsel %vm126, %v767, %v831
  %v933 = vsel %vm126, %v772, %v833
  %v934 = vsel %vm126, %v777, %v835
  %v935 = vsel %vm126, %v782, %v837
  %v936 = vsel %vm126, %v787, %v839
  %v937 = vsel %vm126, %v792, %v841
  %v938 = vsel %vm135, %v922, %v875
  %v939 = vsel %vm135, %v923, %v877
  %v940 = vsel %vm135, %v924, %v879
  %v941 = vsel %vm135, %v925, %v881
  %v942 = vsel %vm135, %v926, %v883
  %v943 = vsel %vm135, %v927, %v885
  %v944 = vsel %vm135, %v928, %v887
  %v945 = vsel %vm135, %v929, %v889
  %v946 = vsel %vm135, %v930, %v891
  %v947 = vsel %vm135, %v931, %v893
  %v948 = vsel %vm135, %v932, %v895
  %v949 = vsel %vm135, %v933, %v897
  %v950 = vsel %vm135, %v934, %v899
  %v951 = vsel %vm135, %v935, %v901
  %v952 = vsel %vm135, %v936, %v903
  %v953 = vsel %vm135, %v937, %v905
  %954 = vst.msk [vmem:[%s3 + $0x16] sm:$0xff] %vm409, %v938
  %955 = vst.msk [vmem:[%s3 + $0x1e] sm:$0xff] %vm409, %v939
  %956 = vst.msk [vmem:[%s3 + $0x7e] sm:$0xff] %vm409, %v940
  %957 = vst.msk [vmem:[%s3 + $0x86] sm:$0xff] %vm409, %v941
  %958 = vst.msk [vmem:[%s3 + $0xe6] sm:$0xff] %vm409, %v942
  %959 = vst.msk [vmem:[%s3 + $0xee] sm:$0xff] %vm409, %v943
  %960 = vst.msk [vmem:[%s3 + $0x14e] sm:$0xff] %vm409, %v944
  %961 = vst.msk [vmem:[%s3 + $0x156] sm:$0xff] %vm409, %v945
  %962 = vst.msk [vmem:[%s3 + $0x1b6] sm:$0xff] %vm409, %v946
  %963 = vst.msk [vmem:[%s3 + $0x1be] sm:$0xff] %vm409, %v947
  %964 = vst.msk [vmem:[%s3 + $0x21e] sm:$0xff] %vm409, %v948
  %965 = vst.msk [vmem:[%s3 + $0x226] sm:$0xff] %vm409, %v949
  %966 = vst.msk [vmem:[%s3 + $0x286] sm:$0xff] %vm409, %v950
  %967 = vst.msk [vmem:[%s3 + $0x28e] sm:$0xff] %vm409, %v951
  %968 = vst.msk [vmem:[%s3 + $0x2ee] sm:$0xff] %vm409, %v952
  %969 = vst.msk [vmem:[%s3 + $0x2f6] sm:$0xff] %vm409, %v953
  %v970 = vld [vmem:[%s0 + $0x20] sm:$0x3]
  %v971 = vld [vmem:[%s0 + $0x70] sm:$0x3]
  %v972 = vld [vmem:[%s0 + $0xc0] sm:$0x3]
  %v973 = vld [vmem:[%s0 + $0x110] sm:$0x3]
  %v974 = vld [vmem:[%s0 + $0x160] sm:$0x3]
  %v975 = vld [vmem:[%s0 + $0x1b0] sm:$0x3]
  %v976 = vld [vmem:[%s0 + $0x200] sm:$0x3]
  %v977 = vld [vmem:[%s0 + $0x250] sm:$0x3]
  %979 = vset.pattern.permute.xlu0 0
  %980 = vperm.xlu0 %979, %v970
  %v981 = vpop.permute.xlu0 %980
  %984 = vset.pattern.permute.xlu0 0
  %985 = vperm.xlu0 %984, %v971
  %v986 = vpop.permute.xlu0 %985
  %989 = vset.pattern.permute.xlu0 0
  %990 = vperm.xlu0 %989, %v972
  %v991 = vpop.permute.xlu0 %990
  %994 = vset.pattern.permute.xlu0 0
  %995 = vperm.xlu0 %994, %v973
  %v996 = vpop.permute.xlu0 %995
  %999 = vset.pattern.permute.xlu0 0
  %1000 = vperm.xlu0 %999, %v974
  %v1001 = vpop.permute.xlu0 %1000
  %1004 = vset.pattern.permute.xlu0 0
  %1005 = vperm.xlu0 %1004, %v975
  %v1006 = vpop.permute.xlu0 %1005
  %1009 = vset.pattern.permute.xlu0 0
  %1010 = vperm.xlu0 %1009, %v976
  %v1011 = vpop.permute.xlu0 %1010
  %1014 = vset.pattern.permute.xlu0 0
  %1015 = vperm.xlu0 %1014, %v977
  %v1016 = vpop.permute.xlu0 %1015
  %v1018 = vld [vmem:[%s1 + $0x20] sm:$0x3]
  %v1019 = vld [vmem:[%s1 + $0x70] sm:$0x3]
  %v1020 = vld [vmem:[%s1 + $0xc0] sm:$0x3]
  %v1021 = vld [vmem:[%s1 + $0x110] sm:$0x3]
  %v1022 = vld [vmem:[%s1 + $0x160] sm:$0x3]
  %v1023 = vld [vmem:[%s1 + $0x1b0] sm:$0x3]
  %v1024 = vld [vmem:[%s1 + $0x200] sm:$0x3]
  %v1025 = vld [vmem:[%s1 + $0x250] sm:$0x3]
  %1026 = vrot.lane.b32.xlu0 %v970, 2
  %v1027 = vpop.permute.xlu0 %1026
  %1028 = vrot.lane.b32.xlu0 %v971, 2
  %v1029 = vpop.permute.xlu0 %1028
  %1030 = vrot.lane.b32.xlu0 %v972, 2
  %v1031 = vpop.permute.xlu0 %1030
  %1032 = vrot.lane.b32.xlu0 %v973, 2
  %v1033 = vpop.permute.xlu0 %1032
  %1034 = vrot.lane.b32.xlu0 %v974, 2
  %v1035 = vpop.permute.xlu0 %1034
  %1036 = vrot.lane.b32.xlu0 %v975, 2
  %v1037 = vpop.permute.xlu0 %1036
  %1038 = vrot.lane.b32.xlu0 %v976, 2
  %v1039 = vpop.permute.xlu0 %1038
  %1040 = vrot.lane.b32.xlu0 %v977, 2
  %v1041 = vpop.permute.xlu0 %1040
  %1058 = vrot.lane.b32.xlu0 %v1018, 18
  %v1059 = vpop.permute.xlu0 %1058
  %1060 = vrot.lane.b32.xlu0 %v1019, 18
  %v1061 = vpop.permute.xlu0 %1060
  %1062 = vrot.lane.b32.xlu0 %v1020, 18
  %v1063 = vpop.permute.xlu0 %1062
  %1064 = vrot.lane.b32.xlu0 %v1021, 18
  %v1065 = vpop.permute.xlu0 %1064
  %1066 = vrot.lane.b32.xlu0 %v1022, 18
  %v1067 = vpop.permute.xlu0 %1066
  %1068 = vrot.lane.b32.xlu0 %v1023, 18
  %v1069 = vpop.permute.xlu0 %1068
  %1070 = vrot.lane.b32.xlu0 %v1024, 18
  %v1071 = vpop.permute.xlu0 %1070
  %1072 = vrot.lane.b32.xlu0 %v1025, 18
  %v1073 = vpop.permute.xlu0 %1072
  %v1082 = vsel %vm126, %v981, %v1027
  %v1083 = vsel %vm126, %v986, %v1029
  %v1084 = vsel %vm126, %v991, %v1031
  %v1085 = vsel %vm126, %v996, %v1033
  %v1086 = vsel %vm126, %v1001, %v1035
  %v1087 = vsel %vm126, %v1006, %v1037
  %v1088 = vsel %vm126, %v1011, %v1039
  %v1089 = vsel %vm126, %v1016, %v1041
  %v1090 = vsel %vm135, %v1082, %v1059
  %v1091 = vsel %vm135, %v1083, %v1061
  %v1092 = vsel %vm135, %v1084, %v1063
  %v1093 = vsel %vm135, %v1085, %v1065
  %v1094 = vsel %vm135, %v1086, %v1067
  %v1095 = vsel %vm135, %v1087, %v1069
  %v1096 = vsel %vm135, %v1088, %v1071
  %v1097 = vsel %vm135, %v1089, %v1073
  %1098 = vst.msk [vmem:[%s3 + $0x26] sm:$0x3] %vm144, %v1090
  %1099 = vst.msk [vmem:[%s3 + $0x8e] sm:$0x3] %vm144, %v1091
  %1100 = vst.msk [vmem:[%s3 + $0xf6] sm:$0x3] %vm144, %v1092
  %1101 = vst.msk [vmem:[%s3 + $0x15e] sm:$0x3] %vm144, %v1093
  %1102 = vst.msk [vmem:[%s3 + $0x1c6] sm:$0x3] %vm144, %v1094
  %1103 = vst.msk [vmem:[%s3 + $0x22e] sm:$0x3] %vm144, %v1095
  %1104 = vst.msk [vmem:[%s3 + $0x296] sm:$0x3] %vm144, %v1096
  %1105 = vst.msk [vmem:[%s3 + $0x2fe] sm:$0x3] %vm144, %v1097
  %v1106 = vld [vmem:[%s0 + $0x1e] sm:$0x3]
  %v1107 = vld [vmem:[%s0 + $0x6e] sm:$0x3]
  %v1108 = vld [vmem:[%s0 + $0xbe] sm:$0x3]
  %v1109 = vld [vmem:[%s0 + $0x10e] sm:$0x3]
  %v1110 = vld [vmem:[%s0 + $0x15e] sm:$0x3]
  %v1111 = vld [vmem:[%s0 + $0x1ae] sm:$0x3]
  %v1112 = vld [vmem:[%s0 + $0x1fe] sm:$0x3]
  %v1113 = vld [vmem:[%s0 + $0x24e] sm:$0x3]
  %1115 = vset.pattern.permute.xlu0 0
  %1116 = vperm.xlu0 %1115, %v1106
  %v1117 = vpop.permute.xlu0 %1116
  %1120 = vset.pattern.permute.xlu0 0
  %1121 = vperm.xlu0 %1120, %v1107
  %v1122 = vpop.permute.xlu0 %1121
  %1125 = vset.pattern.permute.xlu0 0
  %1126 = vperm.xlu0 %1125, %v1108
  %v1127 = vpop.permute.xlu0 %1126
  %1130 = vset.pattern.permute.xlu0 0
  %1131 = vperm.xlu0 %1130, %v1109
  %v1132 = vpop.permute.xlu0 %1131
  %1135 = vset.pattern.permute.xlu0 0
  %1136 = vperm.xlu0 %1135, %v1110
  %v1137 = vpop.permute.xlu0 %1136
  %1140 = vset.pattern.permute.xlu0 0
  %1141 = vperm.xlu0 %1140, %v1111
  %v1142 = vpop.permute.xlu0 %1141
  %1145 = vset.pattern.permute.xlu0 0
  %1146 = vperm.xlu0 %1145, %v1112
  %v1147 = vpop.permute.xlu0 %1146
  %1150 = vset.pattern.permute.xlu0 0
  %1151 = vperm.xlu0 %1150, %v1113
  %v1152 = vpop.permute.xlu0 %1151
  %v1154 = vld [vmem:[%s1 + $0x1e] sm:$0x3]
  %v1155 = vld [vmem:[%s1 + $0x6e] sm:$0x3]
  %v1156 = vld [vmem:[%s1 + $0xbe] sm:$0x3]
  %v1157 = vld [vmem:[%s1 + $0x10e] sm:$0x3]
  %v1158 = vld [vmem:[%s1 + $0x15e] sm:$0x3]
  %v1159 = vld [vmem:[%s1 + $0x1ae] sm:$0x3]
  %v1160 = vld [vmem:[%s1 + $0x1fe] sm:$0x3]
  %v1161 = vld [vmem:[%s1 + $0x24e] sm:$0x3]
  %1162 = vrot.lane.b32.xlu0 %v1106, 2
  %v1163 = vpop.permute.xlu0 %1162
  %1164 = vrot.lane.b32.xlu0 %v1107, 2
  %v1165 = vpop.permute.xlu0 %1164
  %1166 = vrot.lane.b32.xlu0 %v1108, 2
  %v1167 = vpop.permute.xlu0 %1166
  %1168 = vrot.lane.b32.xlu0 %v1109, 2
  %v1169 = vpop.permute.xlu0 %1168
  %1170 = vrot.lane.b32.xlu0 %v1110, 2
  %v1171 = vpop.permute.xlu0 %1170
  %1172 = vrot.lane.b32.xlu0 %v1111, 2
  %v1173 = vpop.permute.xlu0 %1172
  %1174 = vrot.lane.b32.xlu0 %v1112, 2
  %v1175 = vpop.permute.xlu0 %1174
  %1176 = vrot.lane.b32.xlu0 %v1113, 2
  %v1177 = vpop.permute.xlu0 %1176
  %1194 = vrot.lane.b32.xlu0 %v1154, 18
  %v1195 = vpop.permute.xlu0 %1194
  %1196 = vrot.lane.b32.xlu0 %v1155, 18
  %v1197 = vpop.permute.xlu0 %1196
  %1198 = vrot.lane.b32.xlu0 %v1156, 18
  %v1199 = vpop.permute.xlu0 %1198
  %1200 = vrot.lane.b32.xlu0 %v1157, 18
  %v1201 = vpop.permute.xlu0 %1200
  %1202 = vrot.lane.b32.xlu0 %v1158, 18
  %v1203 = vpop.permute.xlu0 %1202
  %1204 = vrot.lane.b32.xlu0 %v1159, 18
  %v1205 = vpop.permute.xlu0 %1204
  %1206 = vrot.lane.b32.xlu0 %v1160, 18
  %v1207 = vpop.permute.xlu0 %1206
  %1208 = vrot.lane.b32.xlu0 %v1161, 18
  %v1209 = vpop.permute.xlu0 %1208
  %v1218 = vsel %vm126, %v1117, %v1163
  %v1219 = vsel %vm126, %v1122, %v1165
  %v1220 = vsel %vm126, %v1127, %v1167
  %v1221 = vsel %vm126, %v1132, %v1169
  %v1222 = vsel %vm126, %v1137, %v1171
  %v1223 = vsel %vm126, %v1142, %v1173
  %v1224 = vsel %vm126, %v1147, %v1175
  %v1225 = vsel %vm126, %v1152, %v1177
  %v1226 = vsel %vm135, %v1218, %v1195
  %v1227 = vsel %vm135, %v1219, %v1197
  %v1228 = vsel %vm135, %v1220, %v1199
  %v1229 = vsel %vm135, %v1221, %v1201
  %v1230 = vsel %vm135, %v1222, %v1203
  %v1231 = vsel %vm135, %v1223, %v1205
  %v1232 = vsel %vm135, %v1224, %v1207
  %v1233 = vsel %vm135, %v1225, %v1209
  %1234 = vst.msk [vmem:[%s3 + $0x28] sm:$0x3] %vm144, %v1226
  %1235 = vst.msk [vmem:[%s3 + $0x90] sm:$0x3] %vm144, %v1227
  %1236 = vst.msk [vmem:[%s3 + $0xf8] sm:$0x3] %vm144, %v1228
  %1237 = vst.msk [vmem:[%s3 + $0x160] sm:$0x3] %vm144, %v1229
  %1238 = vst.msk [vmem:[%s3 + $0x1c8] sm:$0x3] %vm144, %v1230
  %1239 = vst.msk [vmem:[%s3 + $0x230] sm:$0x3] %vm144, %v1231
  %1240 = vst.msk [vmem:[%s3 + $0x298] sm:$0x3] %vm144, %v1232
  %1241 = vst.msk [vmem:[%s3 + $0x300] sm:$0x3] %vm144, %v1233
  %v1242 = vld [vmem:[%s0 + $0x20] sm:$0xff]
  %v1243 = vld [vmem:[%s0 + $0x28] sm:$0xff]
  %v1244 = vld [vmem:[%s0 + $0x70] sm:$0xff]
  %v1245 = vld [vmem:[%s0 + $0x78] sm:$0xff]
  %v1246 = vld [vmem:[%s0 + $0xc0] sm:$0xff]
  %v1247 = vld [vmem:[%s0 + $0xc8] sm:$0xff]
  %v1248 = vld [vmem:[%s0 + $0x110] sm:$0xff]
  %v1249 = vld [vmem:[%s0 + $0x118] sm:$0xff]
  %v1250 = vld [vmem:[%s0 + $0x160] sm:$0xff]
  %v1251 = vld [vmem:[%s0 + $0x168] sm:$0xff]
  %v1252 = vld [vmem:[%s0 + $0x1b0] sm:$0xff]
  %v1253 = vld [vmem:[%s0 + $0x1b8] sm:$0xff]
  %v1254 = vld [vmem:[%s0 + $0x200] sm:$0xff]
  %v1255 = vld [vmem:[%s0 + $0x208] sm:$0xff]
  %v1256 = vld [vmem:[%s0 + $0x250] sm:$0xff]
  %v1257 = vld [vmem:[%s0 + $0x258] sm:$0xff]
  %1259 = vset.pattern.permute.xlu0 0
  %1260 = vperm.xlu0 %1259, %v1242
  %v1261 = vpop.permute.xlu0 %1260
  %1264 = vset.pattern.permute.xlu0 0
  %1265 = vperm.xlu0 %1264, %v1243
  %v1266 = vpop.permute.xlu0 %1265
  %1269 = vset.pattern.permute.xlu0 0
  %1270 = vperm.xlu0 %1269, %v1244
  %v1271 = vpop.permute.xlu0 %1270
  %1274 = vset.pattern.permute.xlu0 0
  %1275 = vperm.xlu0 %1274, %v1245
  %v1276 = vpop.permute.xlu0 %1275
  %1279 = vset.pattern.permute.xlu0 0
  %1280 = vperm.xlu0 %1279, %v1246
  %v1281 = vpop.permute.xlu0 %1280
  %1284 = vset.pattern.permute.xlu0 0
  %1285 = vperm.xlu0 %1284, %v1247
  %v1286 = vpop.permute.xlu0 %1285
  %1289 = vset.pattern.permute.xlu0 0
  %1290 = vperm.xlu0 %1289, %v1248
  %v1291 = vpop.permute.xlu0 %1290
  %1294 = vset.pattern.permute.xlu0 0
  %1295 = vperm.xlu0 %1294, %v1249
  %v1296 = vpop.permute.xlu0 %1295
  %1299 = vset.pattern.permute.xlu0 0
  %1300 = vperm.xlu0 %1299, %v1250
  %v1301 = vpop.permute.xlu0 %1300
  %1304 = vset.pattern.permute.xlu0 0
  %1305 = vperm.xlu0 %1304, %v1251
  %v1306 = vpop.permute.xlu0 %1305
  %1309 = vset.pattern.permute.xlu0 0
  %1310 = vperm.xlu0 %1309, %v1252
  %v1311 = vpop.permute.xlu0 %1310
  %1314 = vset.pattern.permute.xlu0 0
  %1315 = vperm.xlu0 %1314, %v1253
  %v1316 = vpop.permute.xlu0 %1315
  %1319 = vset.pattern.permute.xlu0 0
  %1320 = vperm.xlu0 %1319, %v1254
  %v1321 = vpop.permute.xlu0 %1320
  %1324 = vset.pattern.permute.xlu0 0
  %1325 = vperm.xlu0 %1324, %v1255
  %v1326 = vpop.permute.xlu0 %1325
  %1329 = vset.pattern.permute.xlu0 0
  %1330 = vperm.xlu0 %1329, %v1256
  %v1331 = vpop.permute.xlu0 %1330
  %1334 = vset.pattern.permute.xlu0 0
  %1335 = vperm.xlu0 %1334, %v1257
  %v1336 = vpop.permute.xlu0 %1335
  %v1338 = vld [vmem:[%s1 + $0x20] sm:$0xff]
  %v1339 = vld [vmem:[%s1 + $0x28] sm:$0xff]
  %v1340 = vld [vmem:[%s1 + $0x70] sm:$0xff]
  %v1341 = vld [vmem:[%s1 + $0x78] sm:$0xff]
  %v1342 = vld [vmem:[%s1 + $0xc0] sm:$0xff]
  %v1343 = vld [vmem:[%s1 + $0xc8] sm:$0xff]
  %v1344 = vld [vmem:[%s1 + $0x110] sm:$0xff]
  %v1345 = vld [vmem:[%s1 + $0x118] sm:$0xff]
  %v1346 = vld [vmem:[%s1 + $0x160] sm:$0xff]
  %v1347 = vld [vmem:[%s1 + $0x168] sm:$0xff]
  %v1348 = vld [vmem:[%s1 + $0x1b0] sm:$0xff]
  %v1349 = vld [vmem:[%s1 + $0x1b8] sm:$0xff]
  %v1350 = vld [vmem:[%s1 + $0x200] sm:$0xff]
  %v1351 = vld [vmem:[%s1 + $0x208] sm:$0xff]
  %v1352 = vld [vmem:[%s1 + $0x250] sm:$0xff]
  %v1353 = vld [vmem:[%s1 + $0x258] sm:$0xff]
  %1354 = vrot.lane.b32.xlu0 %v1242, 2
  %v1355 = vpop.permute.xlu0 %1354
  %1356 = vrot.lane.b32.xlu0 %v1243, 2
  %v1357 = vpop.permute.xlu0 %1356
  %1358 = vrot.lane.b32.xlu0 %v1244, 2
  %v1359 = vpop.permute.xlu0 %1358
  %1360 = vrot.lane.b32.xlu0 %v1245, 2
  %v1361 = vpop.permute.xlu0 %1360
  %1362 = vrot.lane.b32.xlu0 %v1246, 2
  %v1363 = vpop.permute.xlu0 %1362
  %1364 = vrot.lane.b32.xlu0 %v1247, 2
  %v1365 = vpop.permute.xlu0 %1364
  %1366 = vrot.lane.b32.xlu0 %v1248, 2
  %v1367 = vpop.permute.xlu0 %1366
  %1368 = vrot.lane.b32.xlu0 %v1249, 2
  %v1369 = vpop.permute.xlu0 %1368
  %1370 = vrot.lane.b32.xlu0 %v1250, 2
  %v1371 = vpop.permute.xlu0 %1370
  %1372 = vrot.lane.b32.xlu0 %v1251, 2
  %v1373 = vpop.permute.xlu0 %1372
  %1374 = vrot.lane.b32.xlu0 %v1252, 2
  %v1375 = vpop.permute.xlu0 %1374
  %1376 = vrot.lane.b32.xlu0 %v1253, 2
  %v1377 = vpop.permute.xlu0 %1376
  %1378 = vrot.lane.b32.xlu0 %v1254, 2
  %v1379 = vpop.permute.xlu0 %1378
  %1380 = vrot.lane.b32.xlu0 %v1255, 2
  %v1381 = vpop.permute.xlu0 %1380
  %1382 = vrot.lane.b32.xlu0 %v1256, 2
  %v1383 = vpop.permute.xlu0 %1382
  %1384 = vrot.lane.b32.xlu0 %v1257, 2
  %v1385 = vpop.permute.xlu0 %1384
  %1418 = vrot.lane.b32.xlu0 %v1338, 18
  %v1419 = vpop.permute.xlu0 %1418
  %1420 = vrot.lane.b32.xlu0 %v1339, 18
  %v1421 = vpop.permute.xlu0 %1420
  %1422 = vrot.lane.b32.xlu0 %v1340, 18
  %v1423 = vpop.permute.xlu0 %1422
  %1424 = vrot.lane.b32.xlu0 %v1341, 18
  %v1425 = vpop.permute.xlu0 %1424
  %1426 = vrot.lane.b32.xlu0 %v1342, 18
  %v1427 = vpop.permute.xlu0 %1426
  %1428 = vrot.lane.b32.xlu0 %v1343, 18
  %v1429 = vpop.permute.xlu0 %1428
  %1430 = vrot.lane.b32.xlu0 %v1344, 18
  %v1431 = vpop.permute.xlu0 %1430
  %1432 = vrot.lane.b32.xlu0 %v1345, 18
  %v1433 = vpop.permute.xlu0 %1432
  %1434 = vrot.lane.b32.xlu0 %v1346, 18
  %v1435 = vpop.permute.xlu0 %1434
  %1436 = vrot.lane.b32.xlu0 %v1347, 18
  %v1437 = vpop.permute.xlu0 %1436
  %1438 = vrot.lane.b32.xlu0 %v1348, 18
  %v1439 = vpop.permute.xlu0 %1438
  %1440 = vrot.lane.b32.xlu0 %v1349, 18
  %v1441 = vpop.permute.xlu0 %1440
  %1442 = vrot.lane.b32.xlu0 %v1350, 18
  %v1443 = vpop.permute.xlu0 %1442
  %1444 = vrot.lane.b32.xlu0 %v1351, 18
  %v1445 = vpop.permute.xlu0 %1444
  %1446 = vrot.lane.b32.xlu0 %v1352, 18
  %v1447 = vpop.permute.xlu0 %1446
  %1448 = vrot.lane.b32.xlu0 %v1353, 18
  %v1449 = vpop.permute.xlu0 %1448
  %v1466 = vsel %vm126, %v1261, %v1355
  %v1467 = vsel %vm126, %v1266, %v1357
  %v1468 = vsel %vm126, %v1271, %v1359
  %v1469 = vsel %vm126, %v1276, %v1361
  %v1470 = vsel %vm126, %v1281, %v1363
  %v1471 = vsel %vm126, %v1286, %v1365
  %v1472 = vsel %vm126, %v1291, %v1367
  %v1473 = vsel %vm126, %v1296, %v1369
  %v1474 = vsel %vm126, %v1301, %v1371
  %v1475 = vsel %vm126, %v1306, %v1373
  %v1476 = vsel %vm126, %v1311, %v1375
  %v1477 = vsel %vm126, %v1316, %v1377
  %v1478 = vsel %vm126, %v1321, %v1379
  %v1479 = vsel %vm126, %v1326, %v1381
  %v1480 = vsel %vm126, %v1331, %v1383
  %v1481 = vsel %vm126, %v1336, %v1385
  %v1482 = vsel %vm135, %v1466, %v1419
  %v1483 = vsel %vm135, %v1467, %v1421
  %v1484 = vsel %vm135, %v1468, %v1423
  %v1485 = vsel %vm135, %v1469, %v1425
  %v1486 = vsel %vm135, %v1470, %v1427
  %v1487 = vsel %vm135, %v1471, %v1429
  %v1488 = vsel %vm135, %v1472, %v1431
  %v1489 = vsel %vm135, %v1473, %v1433
  %v1490 = vsel %vm135, %v1474, %v1435
  %v1491 = vsel %vm135, %v1475, %v1437
  %v1492 = vsel %vm135, %v1476, %v1439
  %v1493 = vsel %vm135, %v1477, %v1441
  %v1494 = vsel %vm135, %v1478, %v1443
  %v1495 = vsel %vm135, %v1479, %v1445
  %v1496 = vsel %vm135, %v1480, %v1447
  %v1497 = vsel %vm135, %v1481, %v1449
  %1498 = vst.msk [vmem:[%s3 + $0x2a] sm:$0xff] %vm409, %v1482
  %1499 = vst.msk [vmem:[%s3 + $0x32] sm:$0xff] %vm409, %v1483
  %1500 = vst.msk [vmem:[%s3 + $0x92] sm:$0xff] %vm409, %v1484
  %1501 = vst.msk [vmem:[%s3 + $0x9a] sm:$0xff] %vm409, %v1485
  %1502 = vst.msk [vmem:[%s3 + $0xfa] sm:$0xff] %vm409, %v1486
  %1503 = vst.msk [vmem:[%s3 + $0x102] sm:$0xff] %vm409, %v1487
  %1504 = vst.msk [vmem:[%s3 + $0x162] sm:$0xff] %vm409, %v1488
  %1505 = vst.msk [vmem:[%s3 + $0x16a] sm:$0xff] %vm409, %v1489
  %1506 = vst.msk [vmem:[%s3 + $0x1ca] sm:$0xff] %vm409, %v1490
  %1507 = vst.msk [vmem:[%s3 + $0x1d2] sm:$0xff] %vm409, %v1491
  %1508 = vst.msk [vmem:[%s3 + $0x232] sm:$0xff] %vm409, %v1492
  %1509 = vst.msk [vmem:[%s3 + $0x23a] sm:$0xff] %vm409, %v1493
  %1510 = vst.msk [vmem:[%s3 + $0x29a] sm:$0xff] %vm409, %v1494
  %1511 = vst.msk [vmem:[%s3 + $0x2a2] sm:$0xff] %vm409, %v1495
  %1512 = vst.msk [vmem:[%s3 + $0x302] sm:$0xff] %vm409, %v1496
  %1513 = vst.msk [vmem:[%s3 + $0x30a] sm:$0xff] %vm409, %v1497
  %v1514 = vld [vmem:[%s0 + $0x30] sm:$0x3]
  %v1515 = vld [vmem:[%s0 + $0x80] sm:$0x3]
  %v1516 = vld [vmem:[%s0 + $0xd0] sm:$0x3]
  %v1517 = vld [vmem:[%s0 + $0x120] sm:$0x3]
  %v1518 = vld [vmem:[%s0 + $0x170] sm:$0x3]
  %v1519 = vld [vmem:[%s0 + $0x1c0] sm:$0x3]
  %v1520 = vld [vmem:[%s0 + $0x210] sm:$0x3]
  %v1521 = vld [vmem:[%s0 + $0x260] sm:$0x3]
  %1523 = vset.pattern.permute.xlu0 0
  %1524 = vperm.xlu0 %1523, %v1514
  %v1525 = vpop.permute.xlu0 %1524
  %1528 = vset.pattern.permute.xlu0 0
  %1529 = vperm.xlu0 %1528, %v1515
  %v1530 = vpop.permute.xlu0 %1529
  %1533 = vset.pattern.permute.xlu0 0
  %1534 = vperm.xlu0 %1533, %v1516
  %v1535 = vpop.permute.xlu0 %1534
  %1538 = vset.pattern.permute.xlu0 0
  %1539 = vperm.xlu0 %1538, %v1517
  %v1540 = vpop.permute.xlu0 %1539
  %1543 = vset.pattern.permute.xlu0 0
  %1544 = vperm.xlu0 %1543, %v1518
  %v1545 = vpop.permute.xlu0 %1544
  %1548 = vset.pattern.permute.xlu0 0
  %1549 = vperm.xlu0 %1548, %v1519
  %v1550 = vpop.permute.xlu0 %1549
  %1553 = vset.pattern.permute.xlu0 0
  %1554 = vperm.xlu0 %1553, %v1520
  %v1555 = vpop.permute.xlu0 %1554
  %1558 = vset.pattern.permute.xlu0 0
  %1559 = vperm.xlu0 %1558, %v1521
  %v1560 = vpop.permute.xlu0 %1559
  %v1562 = vld [vmem:[%s1 + $0x30] sm:$0x3]
  %v1563 = vld [vmem:[%s1 + $0x80] sm:$0x3]
  %v1564 = vld [vmem:[%s1 + $0xd0] sm:$0x3]
  %v1565 = vld [vmem:[%s1 + $0x120] sm:$0x3]
  %v1566 = vld [vmem:[%s1 + $0x170] sm:$0x3]
  %v1567 = vld [vmem:[%s1 + $0x1c0] sm:$0x3]
  %v1568 = vld [vmem:[%s1 + $0x210] sm:$0x3]
  %v1569 = vld [vmem:[%s1 + $0x260] sm:$0x3]
  %1570 = vrot.lane.b32.xlu0 %v1514, 2
  %v1571 = vpop.permute.xlu0 %1570
  %1572 = vrot.lane.b32.xlu0 %v1515, 2
  %v1573 = vpop.permute.xlu0 %1572
  %1574 = vrot.lane.b32.xlu0 %v1516, 2
  %v1575 = vpop.permute.xlu0 %1574
  %1576 = vrot.lane.b32.xlu0 %v1517, 2
  %v1577 = vpop.permute.xlu0 %1576
  %1578 = vrot.lane.b32.xlu0 %v1518, 2
  %v1579 = vpop.permute.xlu0 %1578
  %1580 = vrot.lane.b32.xlu0 %v1519, 2
  %v1581 = vpop.permute.xlu0 %1580
  %1582 = vrot.lane.b32.xlu0 %v1520, 2
  %v1583 = vpop.permute.xlu0 %1582
  %1584 = vrot.lane.b32.xlu0 %v1521, 2
  %v1585 = vpop.permute.xlu0 %1584
  %1602 = vrot.lane.b32.xlu0 %v1562, 18
  %v1603 = vpop.permute.xlu0 %1602
  %1604 = vrot.lane.b32.xlu0 %v1563, 18
  %v1605 = vpop.permute.xlu0 %1604
  %1606 = vrot.lane.b32.xlu0 %v1564, 18
  %v1607 = vpop.permute.xlu0 %1606
  %1608 = vrot.lane.b32.xlu0 %v1565, 18
  %v1609 = vpop.permute.xlu0 %1608
  %1610 = vrot.lane.b32.xlu0 %v1566, 18
  %v1611 = vpop.permute.xlu0 %1610
  %1612 = vrot.lane.b32.xlu0 %v1567, 18
  %v1613 = vpop.permute.xlu0 %1612
  %1614 = vrot.lane.b32.xlu0 %v1568, 18
  %v1615 = vpop.permute.xlu0 %1614
  %1616 = vrot.lane.b32.xlu0 %v1569, 18
  %v1617 = vpop.permute.xlu0 %1616
  %v1626 = vsel %vm126, %v1525, %v1571
  %v1627 = vsel %vm126, %v1530, %v1573
  %v1628 = vsel %vm126, %v1535, %v1575
  %v1629 = vsel %vm126, %v1540, %v1577
  %v1630 = vsel %vm126, %v1545, %v1579
  %v1631 = vsel %vm126, %v1550, %v1581
  %v1632 = vsel %vm126, %v1555, %v1583
  %v1633 = vsel %vm126, %v1560, %v1585
  %v1634 = vsel %vm135, %v1626, %v1603
  %v1635 = vsel %vm135, %v1627, %v1605
  %v1636 = vsel %vm135, %v1628, %v1607
  %v1637 = vsel %vm135, %v1629, %v1609
  %v1638 = vsel %vm135, %v1630, %v1611
  %v1639 = vsel %vm135, %v1631, %v1613
  %v1640 = vsel %vm135, %v1632, %v1615
  %v1641 = vsel %vm135, %v1633, %v1617
  %1642 = vst.msk [vmem:[%s3 + $0x3a] sm:$0x3] %vm144, %v1634
  %1643 = vst.msk [vmem:[%s3 + $0xa2] sm:$0x3] %vm144, %v1635
  %1644 = vst.msk [vmem:[%s3 + $0x10a] sm:$0x3] %vm144, %v1636
  %1645 = vst.msk [vmem:[%s3 + $0x172] sm:$0x3] %vm144, %v1637
  %1646 = vst.msk [vmem:[%s3 + $0x1da] sm:$0x3] %vm144, %v1638
  %1647 = vst.msk [vmem:[%s3 + $0x242] sm:$0x3] %vm144, %v1639
  %1648 = vst.msk [vmem:[%s3 + $0x2aa] sm:$0x3] %vm144, %v1640
  %1649 = vst.msk [vmem:[%s3 + $0x312] sm:$0x3] %vm144, %v1641
  %v1650 = vld [vmem:[%s0 + $0x2e] sm:$0x3]
  %v1651 = vld [vmem:[%s0 + $0x7e] sm:$0x3]
  %v1652 = vld [vmem:[%s0 + $0xce] sm:$0x3]
  %v1653 = vld [vmem:[%s0 + $0x11e] sm:$0x3]
  %v1654 = vld [vmem:[%s0 + $0x16e] sm:$0x3]
  %v1655 = vld [vmem:[%s0 + $0x1be] sm:$0x3]
  %v1656 = vld [vmem:[%s0 + $0x20e] sm:$0x3]
  %v1657 = vld [vmem:[%s0 + $0x25e] sm:$0x3]
  %1659 = vset.pattern.permute.xlu0 0
  %1660 = vperm.xlu0 %1659, %v1650
  %v1661 = vpop.permute.xlu0 %1660
  %1664 = vset.pattern.permute.xlu0 0
  %1665 = vperm.xlu0 %1664, %v1651
  %v1666 = vpop.permute.xlu0 %1665
  %1669 = vset.pattern.permute.xlu0 0
  %1670 = vperm.xlu0 %1669, %v1652
  %v1671 = vpop.permute.xlu0 %1670
  %1674 = vset.pattern.permute.xlu0 0
  %1675 = vperm.xlu0 %1674, %v1653
  %v1676 = vpop.permute.xlu0 %1675
  %1679 = vset.pattern.permute.xlu0 0
  %1680 = vperm.xlu0 %1679, %v1654
  %v1681 = vpop.permute.xlu0 %1680
  %1684 = vset.pattern.permute.xlu0 0
  %1685 = vperm.xlu0 %1684, %v1655
  %v1686 = vpop.permute.xlu0 %1685
  %1689 = vset.pattern.permute.xlu0 0
  %1690 = vperm.xlu0 %1689, %v1656
  %v1691 = vpop.permute.xlu0 %1690
  %1694 = vset.pattern.permute.xlu0 0
  %1695 = vperm.xlu0 %1694, %v1657
  %v1696 = vpop.permute.xlu0 %1695
  %v1698 = vld [vmem:[%s1 + $0x2e] sm:$0x3]
  %v1699 = vld [vmem:[%s1 + $0x7e] sm:$0x3]
  %v1700 = vld [vmem:[%s1 + $0xce] sm:$0x3]
  %v1701 = vld [vmem:[%s1 + $0x11e] sm:$0x3]
  %v1702 = vld [vmem:[%s1 + $0x16e] sm:$0x3]
  %v1703 = vld [vmem:[%s1 + $0x1be] sm:$0x3]
  %v1704 = vld [vmem:[%s1 + $0x20e] sm:$0x3]
  %v1705 = vld [vmem:[%s1 + $0x25e] sm:$0x3]
  %1706 = vrot.lane.b32.xlu0 %v1650, 2
  %v1707 = vpop.permute.xlu0 %1706
  %1708 = vrot.lane.b32.xlu0 %v1651, 2
  %v1709 = vpop.permute.xlu0 %1708
  %1710 = vrot.lane.b32.xlu0 %v1652, 2
  %v1711 = vpop.permute.xlu0 %1710
  %1712 = vrot.lane.b32.xlu0 %v1653, 2
  %v1713 = vpop.permute.xlu0 %1712
  %1714 = vrot.lane.b32.xlu0 %v1654, 2
  %v1715 = vpop.permute.xlu0 %1714
  %1716 = vrot.lane.b32.xlu0 %v1655, 2
  %v1717 = vpop.permute.xlu0 %1716
  %1718 = vrot.lane.b32.xlu0 %v1656, 2
  %v1719 = vpop.permute.xlu0 %1718
  %1720 = vrot.lane.b32.xlu0 %v1657, 2
  %v1721 = vpop.permute.xlu0 %1720
  %1738 = vrot.lane.b32.xlu0 %v1698, 18
  %v1739 = vpop.permute.xlu0 %1738
  %1740 = vrot.lane.b32.xlu0 %v1699, 18
  %v1741 = vpop.permute.xlu0 %1740
  %1742 = vrot.lane.b32.xlu0 %v1700, 18
  %v1743 = vpop.permute.xlu0 %1742
  %1744 = vrot.lane.b32.xlu0 %v1701, 18
  %v1745 = vpop.permute.xlu0 %1744
  %1746 = vrot.lane.b32.xlu0 %v1702, 18
  %v1747 = vpop.permute.xlu0 %1746
  %1748 = vrot.lane.b32.xlu0 %v1703, 18
  %v1749 = vpop.permute.xlu0 %1748
  %1750 = vrot.lane.b32.xlu0 %v1704, 18
  %v1751 = vpop.permute.xlu0 %1750
  %1752 = vrot.lane.b32.xlu0 %v1705, 18
  %v1753 = vpop.permute.xlu0 %1752
  %v1762 = vsel %vm126, %v1661, %v1707
  %v1763 = vsel %vm126, %v1666, %v1709
  %v1764 = vsel %vm126, %v1671, %v1711
  %v1765 = vsel %vm126, %v1676, %v1713
  %v1766 = vsel %vm126, %v1681, %v1715
  %v1767 = vsel %vm126, %v1686, %v1717
  %v1768 = vsel %vm126, %v1691, %v1719
  %v1769 = vsel %vm126, %v1696, %v1721
  %v1770 = vsel %vm135, %v1762, %v1739
  %v1771 = vsel %vm135, %v1763, %v1741
  %v1772 = vsel %vm135, %v1764, %v1743
  %v1773 = vsel %vm135, %v1765, %v1745
  %v1774 = vsel %vm135, %v1766, %v1747
  %v1775 = vsel %vm135, %v1767, %v1749
  %v1776 = vsel %vm135, %v1768, %v1751
  %v1777 = vsel %vm135, %v1769, %v1753
  %1778 = vst.msk [vmem:[%s3 + $0x3c] sm:$0x3] %vm144, %v1770
  %1779 = vst.msk [vmem:[%s3 + $0xa4] sm:$0x3] %vm144, %v1771
  %1780 = vst.msk [vmem:[%s3 + $0x10c] sm:$0x3] %vm144, %v1772
  %1781 = vst.msk [vmem:[%s3 + $0x174] sm:$0x3] %vm144, %v1773
  %1782 = vst.msk [vmem:[%s3 + $0x1dc] sm:$0x3] %vm144, %v1774
  %1783 = vst.msk [vmem:[%s3 + $0x244] sm:$0x3] %vm144, %v1775
  %1784 = vst.msk [vmem:[%s3 + $0x2ac] sm:$0x3] %vm144, %v1776
  %1785 = vst.msk [vmem:[%s3 + $0x314] sm:$0x3] %vm144, %v1777
  %v1786 = vld [vmem:[%s0 + $0x30] sm:$0xff]
  %v1787 = vld [vmem:[%s0 + $0x38] sm:$0xff]
  %v1788 = vld [vmem:[%s0 + $0x80] sm:$0xff]
  %v1789 = vld [vmem:[%s0 + $0x88] sm:$0xff]
  %v1790 = vld [vmem:[%s0 + $0xd0] sm:$0xff]
  %v1791 = vld [vmem:[%s0 + $0xd8] sm:$0xff]
  %v1792 = vld [vmem:[%s0 + $0x120] sm:$0xff]
  %v1793 = vld [vmem:[%s0 + $0x128] sm:$0xff]
  %v1794 = vld [vmem:[%s0 + $0x170] sm:$0xff]
  %v1795 = vld [vmem:[%s0 + $0x178] sm:$0xff]
  %v1796 = vld [vmem:[%s0 + $0x1c0] sm:$0xff]
  %v1797 = vld [vmem:[%s0 + $0x1c8] sm:$0xff]
  %v1798 = vld [vmem:[%s0 + $0x210] sm:$0xff]
  %v1799 = vld [vmem:[%s0 + $0x218] sm:$0xff]
  %v1800 = vld [vmem:[%s0 + $0x260] sm:$0xff]
  %v1801 = vld [vmem:[%s0 + $0x268] sm:$0xff]
  %1803 = vset.pattern.permute.xlu0 0
  %1804 = vperm.xlu0 %1803, %v1786
  %v1805 = vpop.permute.xlu0 %1804
  %1808 = vset.pattern.permute.xlu0 0
  %1809 = vperm.xlu0 %1808, %v1787
  %v1810 = vpop.permute.xlu0 %1809
  %1813 = vset.pattern.permute.xlu0 0
  %1814 = vperm.xlu0 %1813, %v1788
  %v1815 = vpop.permute.xlu0 %1814
  %1818 = vset.pattern.permute.xlu0 0
  %1819 = vperm.xlu0 %1818, %v1789
  %v1820 = vpop.permute.xlu0 %1819
  %1823 = vset.pattern.permute.xlu0 0
  %1824 = vperm.xlu0 %1823, %v1790
  %v1825 = vpop.permute.xlu0 %1824
  %1828 = vset.pattern.permute.xlu0 0
  %1829 = vperm.xlu0 %1828, %v1791
  %v1830 = vpop.permute.xlu0 %1829
  %1833 = vset.pattern.permute.xlu0 0
  %1834 = vperm.xlu0 %1833, %v1792
  %v1835 = vpop.permute.xlu0 %1834
  %1838 = vset.pattern.permute.xlu0 0
  %1839 = vperm.xlu0 %1838, %v1793
  %v1840 = vpop.permute.xlu0 %1839
  %1843 = vset.pattern.permute.xlu0 0
  %1844 = vperm.xlu0 %1843, %v1794
  %v1845 = vpop.permute.xlu0 %1844
  %1848 = vset.pattern.permute.xlu0 0
  %1849 = vperm.xlu0 %1848, %v1795
  %v1850 = vpop.permute.xlu0 %1849
  %1853 = vset.pattern.permute.xlu0 0
  %1854 = vperm.xlu0 %1853, %v1796
  %v1855 = vpop.permute.xlu0 %1854
  %1858 = vset.pattern.permute.xlu0 0
  %1859 = vperm.xlu0 %1858, %v1797
  %v1860 = vpop.permute.xlu0 %1859
  %1863 = vset.pattern.permute.xlu0 0
  %1864 = vperm.xlu0 %1863, %v1798
  %v1865 = vpop.permute.xlu0 %1864
  %1868 = vset.pattern.permute.xlu0 0
  %1869 = vperm.xlu0 %1868, %v1799
  %v1870 = vpop.permute.xlu0 %1869
  %1873 = vset.pattern.permute.xlu0 0
  %1874 = vperm.xlu0 %1873, %v1800
  %v1875 = vpop.permute.xlu0 %1874
  %1878 = vset.pattern.permute.xlu0 0
  %1879 = vperm.xlu0 %1878, %v1801
  %v1880 = vpop.permute.xlu0 %1879
  %v1882 = vld [vmem:[%s1 + $0x30] sm:$0xff]
  %v1883 = vld [vmem:[%s1 + $0x38] sm:$0xff]
  %v1884 = vld [vmem:[%s1 + $0x80] sm:$0xff]
  %v1885 = vld [vmem:[%s1 + $0x88] sm:$0xff]
  %v1886 = vld [vmem:[%s1 + $0xd0] sm:$0xff]
  %v1887 = vld [vmem:[%s1 + $0xd8] sm:$0xff]
  %v1888 = vld [vmem:[%s1 + $0x120] sm:$0xff]
  %v1889 = vld [vmem:[%s1 + $0x128] sm:$0xff]
  %v1890 = vld [vmem:[%s1 + $0x170] sm:$0xff]
  %v1891 = vld [vmem:[%s1 + $0x178] sm:$0xff]
  %v1892 = vld [vmem:[%s1 + $0x1c0] sm:$0xff]
  %v1893 = vld [vmem:[%s1 + $0x1c8] sm:$0xff]
  %v1894 = vld [vmem:[%s1 + $0x210] sm:$0xff]
  %v1895 = vld [vmem:[%s1 + $0x218] sm:$0xff]
  %v1896 = vld [vmem:[%s1 + $0x260] sm:$0xff]
  %v1897 = vld [vmem:[%s1 + $0x268] sm:$0xff]
  %1898 = vrot.lane.b32.xlu0 %v1786, 2
  %v1899 = vpop.permute.xlu0 %1898
  %1900 = vrot.lane.b32.xlu0 %v1787, 2
  %v1901 = vpop.permute.xlu0 %1900
  %1902 = vrot.lane.b32.xlu0 %v1788, 2
  %v1903 = vpop.permute.xlu0 %1902
  %1904 = vrot.lane.b32.xlu0 %v1789, 2
  %v1905 = vpop.permute.xlu0 %1904
  %1906 = vrot.lane.b32.xlu0 %v1790, 2
  %v1907 = vpop.permute.xlu0 %1906
  %1908 = vrot.lane.b32.xlu0 %v1791, 2
  %v1909 = vpop.permute.xlu0 %1908
  %1910 = vrot.lane.b32.xlu0 %v1792, 2
  %v1911 = vpop.permute.xlu0 %1910
  %1912 = vrot.lane.b32.xlu0 %v1793, 2
  %v1913 = vpop.permute.xlu0 %1912
  %1914 = vrot.lane.b32.xlu0 %v1794, 2
  %v1915 = vpop.permute.xlu0 %1914
  %1916 = vrot.lane.b32.xlu0 %v1795, 2
  %v1917 = vpop.permute.xlu0 %1916
  %1918 = vrot.lane.b32.xlu0 %v1796, 2
  %v1919 = vpop.permute.xlu0 %1918
  %1920 = vrot.lane.b32.xlu0 %v1797, 2
  %v1921 = vpop.permute.xlu0 %1920
  %1922 = vrot.lane.b32.xlu0 %v1798, 2
  %v1923 = vpop.permute.xlu0 %1922
  %1924 = vrot.lane.b32.xlu0 %v1799, 2
  %v1925 = vpop.permute.xlu0 %1924
  %1926 = vrot.lane.b32.xlu0 %v1800, 2
  %v1927 = vpop.permute.xlu0 %1926
  %1928 = vrot.lane.b32.xlu0 %v1801, 2
  %v1929 = vpop.permute.xlu0 %1928
  %1962 = vrot.lane.b32.xlu0 %v1882, 18
  %v1963 = vpop.permute.xlu0 %1962
  %1964 = vrot.lane.b32.xlu0 %v1883, 18
  %v1965 = vpop.permute.xlu0 %1964
  %1966 = vrot.lane.b32.xlu0 %v1884, 18
  %v1967 = vpop.permute.xlu0 %1966
  %1968 = vrot.lane.b32.xlu0 %v1885, 18
  %v1969 = vpop.permute.xlu0 %1968
  %1970 = vrot.lane.b32.xlu0 %v1886, 18
  %v1971 = vpop.permute.xlu0 %1970
  %1972 = vrot.lane.b32.xlu0 %v1887, 18
  %v1973 = vpop.permute.xlu0 %1972
  %1974 = vrot.lane.b32.xlu0 %v1888, 18
  %v1975 = vpop.permute.xlu0 %1974
  %1976 = vrot.lane.b32.xlu0 %v1889, 18
  %v1977 = vpop.permute.xlu0 %1976
  %1978 = vrot.lane.b32.xlu0 %v1890, 18
  %v1979 = vpop.permute.xlu0 %1978
  %1980 = vrot.lane.b32.xlu0 %v1891, 18
  %v1981 = vpop.permute.xlu0 %1980
  %1982 = vrot.lane.b32.xlu0 %v1892, 18
  %v1983 = vpop.permute.xlu0 %1982
  %1984 = vrot.lane.b32.xlu0 %v1893, 18
  %v1985 = vpop.permute.xlu0 %1984
  %1986 = vrot.lane.b32.xlu0 %v1894, 18
  %v1987 = vpop.permute.xlu0 %1986
  %1988 = vrot.lane.b32.xlu0 %v1895, 18
  %v1989 = vpop.permute.xlu0 %1988
  %1990 = vrot.lane.b32.xlu0 %v1896, 18
  %v1991 = vpop.permute.xlu0 %1990
  %1992 = vrot.lane.b32.xlu0 %v1897, 18
  %v1993 = vpop.permute.xlu0 %1992
  %v2010 = vsel %vm126, %v1805, %v1899
  %v2011 = vsel %vm126, %v1810, %v1901
  %v2012 = vsel %vm126, %v1815, %v1903
  %v2013 = vsel %vm126, %v1820, %v1905
  %v2014 = vsel %vm126, %v1825, %v1907
  %v2015 = vsel %vm126, %v1830, %v1909
  %v2016 = vsel %vm126, %v1835, %v1911
  %v2017 = vsel %vm126, %v1840, %v1913
  %v2018 = vsel %vm126, %v1845, %v1915
  %v2019 = vsel %vm126, %v1850, %v1917
  %v2020 = vsel %vm126, %v1855, %v1919
  %v2021 = vsel %vm126, %v1860, %v1921
  %v2022 = vsel %vm126, %v1865, %v1923
  %v2023 = vsel %vm126, %v1870, %v1925
  %v2024 = vsel %vm126, %v1875, %v1927
  %v2025 = vsel %vm126, %v1880, %v1929
  %v2026 = vsel %vm135, %v2010, %v1963
  %v2027 = vsel %vm135, %v2011, %v1965
  %v2028 = vsel %vm135, %v2012, %v1967
  %v2029 = vsel %vm135, %v2013, %v1969
  %v2030 = vsel %vm135, %v2014, %v1971
  %v2031 = vsel %vm135, %v2015, %v1973
  %v2032 = vsel %vm135, %v2016, %v1975
  %v2033 = vsel %vm135, %v2017, %v1977
  %v2034 = vsel %vm135, %v2018, %v1979
  %v2035 = vsel %vm135, %v2019, %v1981
  %v2036 = vsel %vm135, %v2020, %v1983
  %v2037 = vsel %vm135, %v2021, %v1985
  %v2038 = vsel %vm135, %v2022, %v1987
  %v2039 = vsel %vm135, %v2023, %v1989
  %v2040 = vsel %vm135, %v2024, %v1991
  %v2041 = vsel %vm135, %v2025, %v1993
  %2042 = vst.msk [vmem:[%s3 + $0x3e] sm:$0xff] %vm409, %v2026
  %2043 = vst.msk [vmem:[%s3 + $0x46] sm:$0xff] %vm409, %v2027
  %2044 = vst.msk [vmem:[%s3 + $0xa6] sm:$0xff] %vm409, %v2028
  %2045 = vst.msk [vmem:[%s3 + $0xae] sm:$0xff] %vm409, %v2029
  %2046 = vst.msk [vmem:[%s3 + $0x10e] sm:$0xff] %vm409, %v2030
  %2047 = vst.msk [vmem:[%s3 + $0x116] sm:$0xff] %vm409, %v2031
  %2048 = vst.msk [vmem:[%s3 + $0x176] sm:$0xff] %vm409, %v2032
  %2049 = vst.msk [vmem:[%s3 + $0x17e] sm:$0xff] %vm409, %v2033
  %2050 = vst.msk [vmem:[%s3 + $0x1de] sm:$0xff] %vm409, %v2034
  %2051 = vst.msk [vmem:[%s3 + $0x1e6] sm:$0xff] %vm409, %v2035
  %2052 = vst.msk [vmem:[%s3 + $0x246] sm:$0xff] %vm409, %v2036
  %2053 = vst.msk [vmem:[%s3 + $0x24e] sm:$0xff] %vm409, %v2037
  %2054 = vst.msk [vmem:[%s3 + $0x2ae] sm:$0xff] %vm409, %v2038
  %2055 = vst.msk [vmem:[%s3 + $0x2b6] sm:$0xff] %vm409, %v2039
  %2056 = vst.msk [vmem:[%s3 + $0x316] sm:$0xff] %vm409, %v2040
  %2057 = vst.msk [vmem:[%s3 + $0x31e] sm:$0xff] %vm409, %v2041
  %v2058 = vld [vmem:[%s0] sm:$0x3]
  %v2059 = vld [vmem:[%s0 + $0x50] sm:$0x3]
  %v2060 = vld [vmem:[%s0 + $0xa0] sm:$0x3]
  %v2061 = vld [vmem:[%s0 + $0xf0] sm:$0x3]
  %v2062 = vld [vmem:[%s0 + $0x140] sm:$0x3]
  %v2063 = vld [vmem:[%s0 + $0x190] sm:$0x3]
  %v2064 = vld [vmem:[%s0 + $0x1e0] sm:$0x3]
  %v2065 = vld [vmem:[%s0 + $0x230] sm:$0x3]
  %2067 = vset.pattern.permute.xlu0 0
  %2068 = vperm.xlu0 %2067, %v2058
  %v2069 = vpop.permute.xlu0 %2068
  %2072 = vset.pattern.permute.xlu0 0
  %2073 = vperm.xlu0 %2072, %v2059
  %v2074 = vpop.permute.xlu0 %2073
  %2077 = vset.pattern.permute.xlu0 0
  %2078 = vperm.xlu0 %2077, %v2060
  %v2079 = vpop.permute.xlu0 %2078
  %2082 = vset.pattern.permute.xlu0 0
  %2083 = vperm.xlu0 %2082, %v2061
  %v2084 = vpop.permute.xlu0 %2083
  %2087 = vset.pattern.permute.xlu0 0
  %2088 = vperm.xlu0 %2087, %v2062
  %v2089 = vpop.permute.xlu0 %2088
  %2092 = vset.pattern.permute.xlu0 0
  %2093 = vperm.xlu0 %2092, %v2063
  %v2094 = vpop.permute.xlu0 %2093
  %2097 = vset.pattern.permute.xlu0 0
  %2098 = vperm.xlu0 %2097, %v2064
  %v2099 = vpop.permute.xlu0 %2098
  %2102 = vset.pattern.permute.xlu0 0
  %2103 = vperm.xlu0 %2102, %v2065
  %v2104 = vpop.permute.xlu0 %2103
  %v2106 = vld [vmem:[%s1] sm:$0x3]
  %v2107 = vld [vmem:[%s1 + $0x50] sm:$0x3]
  %v2108 = vld [vmem:[%s1 + $0xa0] sm:$0x3]
  %v2109 = vld [vmem:[%s1 + $0xf0] sm:$0x3]
  %v2110 = vld [vmem:[%s1 + $0x140] sm:$0x3]
  %v2111 = vld [vmem:[%s1 + $0x190] sm:$0x3]
  %v2112 = vld [vmem:[%s1 + $0x1e0] sm:$0x3]
  %v2113 = vld [vmem:[%s1 + $0x230] sm:$0x3]
  %2114 = vrot.lane.b32.xlu0 %v2058, 2
  %v2115 = vpop.permute.xlu0 %2114
  %2116 = vrot.lane.b32.xlu0 %v2059, 2
  %v2117 = vpop.permute.xlu0 %2116
  %2118 = vrot.lane.b32.xlu0 %v2060, 2
  %v2119 = vpop.permute.xlu0 %2118
  %2120 = vrot.lane.b32.xlu0 %v2061, 2
  %v2121 = vpop.permute.xlu0 %2120
  %2122 = vrot.lane.b32.xlu0 %v2062, 2
  %v2123 = vpop.permute.xlu0 %2122
  %2124 = vrot.lane.b32.xlu0 %v2063, 2
  %v2125 = vpop.permute.xlu0 %2124
  %2126 = vrot.lane.b32.xlu0 %v2064, 2
  %v2127 = vpop.permute.xlu0 %2126
  %2128 = vrot.lane.b32.xlu0 %v2065, 2
  %v2129 = vpop.permute.xlu0 %2128
  %2146 = vrot.lane.b32.xlu0 %v2106, 18
  %v2147 = vpop.permute.xlu0 %2146
  %2148 = vrot.lane.b32.xlu0 %v2107, 18
  %v2149 = vpop.permute.xlu0 %2148
  %2150 = vrot.lane.b32.xlu0 %v2108, 18
  %v2151 = vpop.permute.xlu0 %2150
  %2152 = vrot.lane.b32.xlu0 %v2109, 18
  %v2153 = vpop.permute.xlu0 %2152
  %2154 = vrot.lane.b32.xlu0 %v2110, 18
  %v2155 = vpop.permute.xlu0 %2154
  %2156 = vrot.lane.b32.xlu0 %v2111, 18
  %v2157 = vpop.permute.xlu0 %2156
  %2158 = vrot.lane.b32.xlu0 %v2112, 18
  %v2159 = vpop.permute.xlu0 %2158
  %2160 = vrot.lane.b32.xlu0 %v2113, 18
  %v2161 = vpop.permute.xlu0 %2160
  %v2170 = vsel %vm126, %v2069, %v2115
  %v2171 = vsel %vm126, %v2074, %v2117
  %v2172 = vsel %vm126, %v2079, %v2119
  %v2173 = vsel %vm126, %v2084, %v2121
  %v2174 = vsel %vm126, %v2089, %v2123
  %v2175 = vsel %vm126, %v2094, %v2125
  %v2176 = vsel %vm126, %v2099, %v2127
  %v2177 = vsel %vm126, %v2104, %v2129
  %v2178 = vsel %vm135, %v2170, %v2147
  %v2179 = vsel %vm135, %v2171, %v2149
  %v2180 = vsel %vm135, %v2172, %v2151
  %v2181 = vsel %vm135, %v2173, %v2153
  %v2182 = vsel %vm135, %v2174, %v2155
  %v2183 = vsel %vm135, %v2175, %v2157
  %v2184 = vsel %vm135, %v2176, %v2159
  %v2185 = vsel %vm135, %v2177, %v2161
  %2186 = vst.msk [vmem:[%s3 + $0x4e] sm:$0x3] %vm144, %v2178
  %2187 = vst.msk [vmem:[%s3 + $0xb6] sm:$0x3] %vm144, %v2179
  %2188 = vst.msk [vmem:[%s3 + $0x11e] sm:$0x3] %vm144, %v2180
  %2189 = vst.msk [vmem:[%s3 + $0x186] sm:$0x3] %vm144, %v2181
  %2190 = vst.msk [vmem:[%s3 + $0x1ee] sm:$0x3] %vm144, %v2182
  %2191 = vst.msk [vmem:[%s3 + $0x256] sm:$0x3] %vm144, %v2183
  %2192 = vst.msk [vmem:[%s3 + $0x2be] sm:$0x3] %vm144, %v2184
  %2193 = vst.msk [vmem:[%s3 + $0x326] sm:$0x3] %vm144, %v2185
  %v2194 = vld [vmem:[%s0] sm:$0xff]
  %v2195 = vld [vmem:[%s0 + $0x8] sm:$0xff]
  %v2196 = vld [vmem:[%s0 + $0x50] sm:$0xff]
  %v2197 = vld [vmem:[%s0 + $0x58] sm:$0xff]
  %v2198 = vld [vmem:[%s0 + $0xa0] sm:$0xff]
  %v2199 = vld [vmem:[%s0 + $0xa8] sm:$0xff]
  %v2200 = vld [vmem:[%s0 + $0xf0] sm:$0xff]
  %v2201 = vld [vmem:[%s0 + $0xf8] sm:$0xff]
  %v2202 = vld [vmem:[%s0 + $0x140] sm:$0xff]
  %v2203 = vld [vmem:[%s0 + $0x148] sm:$0xff]
  %v2204 = vld [vmem:[%s0 + $0x190] sm:$0xff]
  %v2205 = vld [vmem:[%s0 + $0x198] sm:$0xff]
  %v2206 = vld [vmem:[%s0 + $0x1e0] sm:$0xff]
  %v2207 = vld [vmem:[%s0 + $0x1e8] sm:$0xff]
  %v2208 = vld [vmem:[%s0 + $0x230] sm:$0xff]
  %v2209 = vld [vmem:[%s0 + $0x238] sm:$0xff]
  %v2210 = vld [vmem:[%s0 + $0x40] sm:$0xff]
  %v2211 = vld [vmem:[%s0 + $0x48] sm:$0xff]
  %v2212 = vld [vmem:[%s0 + $0x90] sm:$0xff]
  %v2213 = vld [vmem:[%s0 + $0x98] sm:$0xff]
  %v2214 = vld [vmem:[%s0 + $0xe0] sm:$0xff]
  %v2215 = vld [vmem:[%s0 + $0xe8] sm:$0xff]
  %v2216 = vld [vmem:[%s0 + $0x130] sm:$0xff]
  %v2217 = vld [vmem:[%s0 + $0x138] sm:$0xff]
  %v2218 = vld [vmem:[%s0 + $0x180] sm:$0xff]
  %v2219 = vld [vmem:[%s0 + $0x188] sm:$0xff]
  %v2220 = vld [vmem:[%s0 + $0x1d0] sm:$0xff]
  %v2221 = vld [vmem:[%s0 + $0x1d8] sm:$0xff]
  %v2222 = vld [vmem:[%s0 + $0x220] sm:$0xff]
  %v2223 = vld [vmem:[%s0 + $0x228] sm:$0xff]
  %v2224 = vld [vmem:[%s0 + $0x270] sm:$0xff]
  %v2225 = vld [vmem:[%s0 + $0x278] sm:$0xff]
  %v2226 = vld [vmem:[%s1 + $0x40] sm:$0xff]
  %v2227 = vld [vmem:[%s1 + $0x48] sm:$0xff]
  %v2228 = vld [vmem:[%s1 + $0x90] sm:$0xff]
  %v2229 = vld [vmem:[%s1 + $0x98] sm:$0xff]
  %v2230 = vld [vmem:[%s1 + $0xe0] sm:$0xff]
  %v2231 = vld [vmem:[%s1 + $0xe8] sm:$0xff]
  %v2232 = vld [vmem:[%s1 + $0x130] sm:$0xff]
  %v2233 = vld [vmem:[%s1 + $0x138] sm:$0xff]
  %v2234 = vld [vmem:[%s1 + $0x180] sm:$0xff]
  %v2235 = vld [vmem:[%s1 + $0x188] sm:$0xff]
  %v2236 = vld [vmem:[%s1 + $0x1d0] sm:$0xff]
  %v2237 = vld [vmem:[%s1 + $0x1d8] sm:$0xff]
  %v2238 = vld [vmem:[%s1 + $0x220] sm:$0xff]
  %v2239 = vld [vmem:[%s1 + $0x228] sm:$0xff]
  %v2240 = vld [vmem:[%s1 + $0x270] sm:$0xff]
  %v2241 = vld [vmem:[%s1 + $0x278] sm:$0xff]
  %2258 = vrot.lane.b32.xlu0 %v2194, 114
  %v2259 = vpop.permute.xlu0 %2258
  %2260 = vrot.lane.b32.xlu0 %v2195, 114
  %v2261 = vpop.permute.xlu0 %2260
  %2262 = vrot.lane.b32.xlu0 %v2196, 114
  %v2263 = vpop.permute.xlu0 %2262
  %2264 = vrot.lane.b32.xlu0 %v2197, 114
  %v2265 = vpop.permute.xlu0 %2264
  %2266 = vrot.lane.b32.xlu0 %v2198, 114
  %v2267 = vpop.permute.xlu0 %2266
  %2268 = vrot.lane.b32.xlu0 %v2199, 114
  %v2269 = vpop.permute.xlu0 %2268
  %2270 = vrot.lane.b32.xlu0 %v2200, 114
  %v2271 = vpop.permute.xlu0 %2270
  %2272 = vrot.lane.b32.xlu0 %v2201, 114
  %v2273 = vpop.permute.xlu0 %2272
  %2274 = vrot.lane.b32.xlu0 %v2202, 114
  %v2275 = vpop.permute.xlu0 %2274
  %2276 = vrot.lane.b32.xlu0 %v2203, 114
  %v2277 = vpop.permute.xlu0 %2276
  %2278 = vrot.lane.b32.xlu0 %v2204, 114
  %v2279 = vpop.permute.xlu0 %2278
  %2280 = vrot.lane.b32.xlu0 %v2205, 114
  %v2281 = vpop.permute.xlu0 %2280
  %2282 = vrot.lane.b32.xlu0 %v2206, 114
  %v2283 = vpop.permute.xlu0 %2282
  %2284 = vrot.lane.b32.xlu0 %v2207, 114
  %v2285 = vpop.permute.xlu0 %2284
  %2286 = vrot.lane.b32.xlu0 %v2208, 114
  %v2287 = vpop.permute.xlu0 %2286
  %2288 = vrot.lane.b32.xlu0 %v2209, 114
  %v2289 = vpop.permute.xlu0 %2288
  %2322 = vrot.lane.b32.xlu0 %v2210, 2
  %v2323 = vpop.permute.xlu0 %2322
  %2324 = vrot.lane.b32.xlu0 %v2211, 2
  %v2325 = vpop.permute.xlu0 %2324
  %2326 = vrot.lane.b32.xlu0 %v2212, 2
  %v2327 = vpop.permute.xlu0 %2326
  %2328 = vrot.lane.b32.xlu0 %v2213, 2
  %v2329 = vpop.permute.xlu0 %2328
  %2330 = vrot.lane.b32.xlu0 %v2214, 2
  %v2331 = vpop.permute.xlu0 %2330
  %2332 = vrot.lane.b32.xlu0 %v2215, 2
  %v2333 = vpop.permute.xlu0 %2332
  %2334 = vrot.lane.b32.xlu0 %v2216, 2
  %v2335 = vpop.permute.xlu0 %2334
  %2336 = vrot.lane.b32.xlu0 %v2217, 2
  %v2337 = vpop.permute.xlu0 %2336
  %2338 = vrot.lane.b32.xlu0 %v2218, 2
  %v2339 = vpop.permute.xlu0 %2338
  %2340 = vrot.lane.b32.xlu0 %v2219, 2
  %v2341 = vpop.permute.xlu0 %2340
  %2342 = vrot.lane.b32.xlu0 %v2220, 2
  %v2343 = vpop.permute.xlu0 %2342
  %2344 = vrot.lane.b32.xlu0 %v2221, 2
  %v2345 = vpop.permute.xlu0 %2344
  %2346 = vrot.lane.b32.xlu0 %v2222, 2
  %v2347 = vpop.permute.xlu0 %2346
  %2348 = vrot.lane.b32.xlu0 %v2223, 2
  %v2349 = vpop.permute.xlu0 %2348
  %2350 = vrot.lane.b32.xlu0 %v2224, 2
  %v2351 = vpop.permute.xlu0 %2350
  %2352 = vrot.lane.b32.xlu0 %v2225, 2
  %v2353 = vpop.permute.xlu0 %2352
  %2386 = vrot.lane.b32.xlu0 %v2226, 18
  %v2387 = vpop.permute.xlu0 %2386
  %2388 = vrot.lane.b32.xlu0 %v2227, 18
  %v2389 = vpop.permute.xlu0 %2388
  %2390 = vrot.lane.b32.xlu0 %v2228, 18
  %v2391 = vpop.permute.xlu0 %2390
  %2392 = vrot.lane.b32.xlu0 %v2229, 18
  %v2393 = vpop.permute.xlu0 %2392
  %2394 = vrot.lane.b32.xlu0 %v2230, 18
  %v2395 = vpop.permute.xlu0 %2394
  %2396 = vrot.lane.b32.xlu0 %v2231, 18
  %v2397 = vpop.permute.xlu0 %2396
  %2398 = vrot.lane.b32.xlu0 %v2232, 18
  %v2399 = vpop.permute.xlu0 %2398
  %2400 = vrot.lane.b32.xlu0 %v2233, 18
  %v2401 = vpop.permute.xlu0 %2400
  %2402 = vrot.lane.b32.xlu0 %v2234, 18
  %v2403 = vpop.permute.xlu0 %2402
  %2404 = vrot.lane.b32.xlu0 %v2235, 18
  %v2405 = vpop.permute.xlu0 %2404
  %2406 = vrot.lane.b32.xlu0 %v2236, 18
  %v2407 = vpop.permute.xlu0 %2406
  %2408 = vrot.lane.b32.xlu0 %v2237, 18
  %v2409 = vpop.permute.xlu0 %2408
  %2410 = vrot.lane.b32.xlu0 %v2238, 18
  %v2411 = vpop.permute.xlu0 %2410
  %2412 = vrot.lane.b32.xlu0 %v2239, 18
  %v2413 = vpop.permute.xlu0 %2412
  %2414 = vrot.lane.b32.xlu0 %v2240, 18
  %v2415 = vpop.permute.xlu0 %2414
  %2416 = vrot.lane.b32.xlu0 %v2241, 18
  %v2417 = vpop.permute.xlu0 %2416
  %v2434 = vsel %vm126, %v2259, %v2323
  %v2435 = vsel %vm126, %v2261, %v2325
  %v2436 = vsel %vm126, %v2263, %v2327
  %v2437 = vsel %vm126, %v2265, %v2329
  %v2438 = vsel %vm126, %v2267, %v2331
  %v2439 = vsel %vm126, %v2269, %v2333
  %v2440 = vsel %vm126, %v2271, %v2335
  %v2441 = vsel %vm126, %v2273, %v2337
  %v2442 = vsel %vm126, %v2275, %v2339
  %v2443 = vsel %vm126, %v2277, %v2341
  %v2444 = vsel %vm126, %v2279, %v2343
  %v2445 = vsel %vm126, %v2281, %v2345
  %v2446 = vsel %vm126, %v2283, %v2347
  %v2447 = vsel %vm126, %v2285, %v2349
  %v2448 = vsel %vm126, %v2287, %v2351
  %v2449 = vsel %vm126, %v2289, %v2353
  %v2450 = vsel %vm135, %v2434, %v2387
  %v2451 = vsel %vm135, %v2435, %v2389
  %v2452 = vsel %vm135, %v2436, %v2391
  %v2453 = vsel %vm135, %v2437, %v2393
  %v2454 = vsel %vm135, %v2438, %v2395
  %v2455 = vsel %vm135, %v2439, %v2397
  %v2456 = vsel %vm135, %v2440, %v2399
  %v2457 = vsel %vm135, %v2441, %v2401
  %v2458 = vsel %vm135, %v2442, %v2403
  %v2459 = vsel %vm135, %v2443, %v2405
  %v2460 = vsel %vm135, %v2444, %v2407
  %v2461 = vsel %vm135, %v2445, %v2409
  %v2462 = vsel %vm135, %v2446, %v2411
  %v2463 = vsel %vm135, %v2447, %v2413
  %v2464 = vsel %vm135, %v2448, %v2415
  %v2465 = vsel %vm135, %v2449, %v2417
  %v2466 = vld [vmem:[%s2] sm:$0x3]
  %v2467 = vld [vmem:[%s2 + $0x4] sm:$0x3]
  %v2468 = vld [vmem:[%s2 + $0x8] sm:$0x3]
  %v2469 = vld [vmem:[%s2 + $0xc] sm:$0x3]
  %v2470 = vld [vmem:[%s2 + $0x10] sm:$0x3]
  %v2471 = vld [vmem:[%s2 + $0x14] sm:$0x3]
  %v2472 = vld [vmem:[%s2 + $0x18] sm:$0x3]
  %v2473 = vld [vmem:[%s2 + $0x1c] sm:$0x3]
  %2474 = vst.msk [vmem:[%s3 + $0x50] sm:$0x3] %vm144, %v2466
  %2475 = vst.msk [vmem:[%s3 + $0xb8] sm:$0x3] %vm144, %v2467
  %2476 = vst.msk [vmem:[%s3 + $0x120] sm:$0x3] %vm144, %v2468
  %2477 = vst.msk [vmem:[%s3 + $0x188] sm:$0x3] %vm144, %v2469
  %2478 = vst.msk [vmem:[%s3 + $0x1f0] sm:$0x3] %vm144, %v2470
  %2479 = vst.msk [vmem:[%s3 + $0x258] sm:$0x3] %vm144, %v2471
  %2480 = vst.msk [vmem:[%s3 + $0x2c0] sm:$0x3] %vm144, %v2472
  %2481 = vst.msk [vmem:[%s3 + $0x328] sm:$0x3] %vm144, %v2473
  %2482 = vst.msk [vmem:[%s3 + $0x52] sm:$0xff] %vm409, %v2450
  %2483 = vst.msk [vmem:[%s3 + $0x5a] sm:$0xff] %vm409, %v2451
  %2484 = vst.msk [vmem:[%s3 + $0xba] sm:$0xff] %vm409, %v2452
  %2485 = vst.msk [vmem:[%s3 + $0xc2] sm:$0xff] %vm409, %v2453
  %2486 = vst.msk [vmem:[%s3 + $0x122] sm:$0xff] %vm409, %v2454
  %2487 = vst.msk [vmem:[%s3 + $0x12a] sm:$0xff] %vm409, %v2455
  %2488 = vst.msk [vmem:[%s3 + $0x18a] sm:$0xff] %vm409, %v2456
  %2489 = vst.msk [vmem:[%s3 + $0x192] sm:$0xff] %vm409, %v2457
  %2490 = vst.msk [vmem:[%s3 + $0x1f2] sm:$0xff] %vm409, %v2458
  %2491 = vst.msk [vmem:[%s3 + $0x1fa] sm:$0xff] %vm409, %v2459
  %2492 = vst.msk [vmem:[%s3 + $0x25a] sm:$0xff] %vm409, %v2460
  %2493 = vst.msk [vmem:[%s3 + $0x262] sm:$0xff] %vm409, %v2461
  %2494 = vst.msk [vmem:[%s3 + $0x2c2] sm:$0xff] %vm409, %v2462
  %2495 = vst.msk [vmem:[%s3 + $0x2ca] sm:$0xff] %vm409, %v2463
  %2496 = vst.msk [vmem:[%s3 + $0x32a] sm:$0xff] %vm409, %v2464
  %2497 = vst.msk [vmem:[%s3 + $0x332] sm:$0xff] %vm409, %v2465
  %v2498 = vld [vmem:[%s2 + $0x2] sm:$0x3]
  %v2499 = vld [vmem:[%s2 + $0x6] sm:$0x3]
  %v2500 = vld [vmem:[%s2 + $0xa] sm:$0x3]
  %v2501 = vld [vmem:[%s2 + $0xe] sm:$0x3]
  %v2502 = vld [vmem:[%s2 + $0x12] sm:$0x3]
  %v2503 = vld [vmem:[%s2 + $0x16] sm:$0x3]
  %v2504 = vld [vmem:[%s2 + $0x1a] sm:$0x3]
  %v2505 = vld [vmem:[%s2 + $0x1e] sm:$0x3]
  %2506 = vst.msk [vmem:[%s3 + $0x62] sm:$0x3] %vm144, %v2498
  %2507 = vst.msk [vmem:[%s3 + $0xca] sm:$0x3] %vm144, %v2499
  %2508 = vst.msk [vmem:[%s3 + $0x132] sm:$0x3] %vm144, %v2500
  %2509 = vst.msk [vmem:[%s3 + $0x19a] sm:$0x3] %vm144, %v2501
  %2510 = vst.msk [vmem:[%s3 + $0x202] sm:$0x3] %vm144, %v2502
  %2511 = vst.msk [vmem:[%s3 + $0x26a] sm:$0x3] %vm144, %v2503
  %2512 = vst.msk [vmem:[%s3 + $0x2d2] sm:$0x3] %vm144, %v2504
  %2513 = vst.msk [vmem:[%s3 + $0x33a] sm:$0x3] %vm144, %v2505
  // Predicated region
  $region14: #{tpu_custom_call.1} parent=0 // pred_check
    _
  $region15: #{tpu_custom_call.1} parent=0 // pred_check_branch
    %2515 = sbr.rel (0) target = $region17
  $region16: #{tpu_custom_call.1} parent=0 // pred_region
    _
  $region17: #{tpu_custom_call.1} parent=0 // pred_fallthru
    _
  // Predicated region
  $region18: #{tpu_custom_call.1} parent=0 // pred_check
    _
  $region19: #{tpu_custom_call.1} parent=0 // pred_check_branch
    %2517 = sbr.rel (0) target = $region21
  $region20: #{tpu_custom_call.1} parent=0 // pred_region
    _
  $region21: #{tpu_custom_call.1} parent=0 // pred_fallthru
    _

</llo_original>
